<compile_context>
chip_gen: v5e
topology: v5e:2x2
jax: 0.10.0
libtpu: 0.0.40
codegen_flags: <defaults>
</compile_context>

<pallas_src>
import jax
import jax.numpy as jnp
from jax.experimental import pallas as pl
from jax.experimental.pallas import tpu as pltpu


def critic_kernel(x_ref, w1_ref, b1_ref, w2_ref, b2_ref, w3_ref, b3_ref, o_ref):
    # fc1 + relu  (MXU, f32 accumulation)
    h1 = jnp.dot(x_ref[...], w1_ref[...], preferred_element_type=jnp.float32)
    h1 = jnp.maximum(h1 + b1_ref[...], 0.0)
    # fc2 + relu  (MXU, f32 accumulation)
    h2 = jnp.dot(h1, w2_ref[...], preferred_element_type=jnp.float32)
    h2 = jnp.maximum(h2 + b2_ref[...], 0.0)
    # value head: N=1 matmul moved off the MXU onto VPU (mul) + XLU (lane sum).
    # w3_ref is a (1, HP) row; reduction over the lane axis gives (bt,).
    v = jnp.sum(h2 * w3_ref[...], axis=-1)
    # lane-dense (1, bt) store (avoids masked vst.msk partial stores of a
    # 1-wide output column).
    o_ref[...] = (v[None, :] + b3_ref[...]).astype(o_ref.dtype)


def _round_up(n, m):
    return ((n + m - 1) // m) * m


def critic_forward(x, params, *, batch_tile=512):
    """x: [B, state_dim] float32 -> [B, 1] float32."""
    w1, b1, w2, b2, w3, b3 = params
    B, S = x.shape
    H = w1.shape[1]                      # 64

    # --- hidden-dim padding to a full 128-lane width (zeros => identical math)
    HP = max(_round_up(H, 128), 128)
    ph = HP - H
    w1p = jnp.pad(w1, ((0, 0), (0, ph)))            # (S, HP)
    b1p = jnp.pad(b1, ((0, 0), (0, ph)))            # (1, HP)
    w2p = jnp.pad(w2, ((0, ph), (0, ph)))           # (HP, HP)
    b2p = jnp.pad(b2, ((0, 0), (0, ph)))            # (1, HP)
    w3r = jnp.pad(w3.T, ((0, 0), (0, ph)))          # (1, HP) value-head row
    # b3 stays (1, 1)

    # --- batch tiling: big tiles for MXU fill / step-overhead amortization,
    #     gracefully shrink for small batches.
    if B <= batch_tile:
        bt = max(_round_up(B, 8), 8)
    else:
        bt = batch_tile
    Bp = _round_up(B, bt)
    if Bp != B:
        x = jnp.pad(x, ((0, Bp - B), (0, 0)))
    num_tiles = Bp // bt

    out = pl.pallas_call(
        critic_kernel,
        out_shape=jax.ShapeDtypeStruct((1, Bp), jnp.float32),   # lane-dense slab
        grid_spec=pltpu.PrefetchScalarGridSpec(
            num_scalar_prefetch=0,
            grid=(num_tiles,),
            in_specs=[
                pl.BlockSpec((bt, S), lambda i: (i, 0)),     # x tile (streamed)
                pl.BlockSpec((S, HP), lambda i: (0, 0)),     # w1 (resident)
                pl.BlockSpec((1, HP), lambda i: (0, 0)),     # b1
                pl.BlockSpec((HP, HP), lambda i: (0, 0)),    # w2
                pl.BlockSpec((1, HP), lambda i: (0, 0)),     # b2
                pl.BlockSpec((1, HP), lambda i: (0, 0)),     # w3 row
                pl.BlockSpec((1, 1), lambda i: (0, 0)),      # b3
            ],
            out_specs=pl.BlockSpec((1, bt), lambda i: (0, i)),
        ),
        compiler_params=pltpu.CompilerParams(
            dimension_semantics=("parallel",),   # shards grid across TCs on v7x
        ),
    )(x, w1p, b1p, w2p, b2p, w3r, b3)

    return out.reshape(Bp, 1)[:B]


def init_params(key, state_dim, hidden=64):
    """Deterministic init mirroring nn.Linear's U(-1/sqrt(fan_in), 1/sqrt(fan_in)).

    Weights are stored as [in_features, out_features] (transposed vs PyTorch).
    """
    ks = jax.random.split(key, 6)

    def uniform(k, shape, fan_in):
        bound = 1.0 / jnp.sqrt(fan_in)
        return jax.random.uniform(k, shape, jnp.float32, -bound, bound)

    w1 = uniform(ks[0], (state_dim, hidden), state_dim)
    b1 = uniform(ks[1], (1, hidden), state_dim)
    w2 = uniform(ks[2], (hidden, hidden), hidden)
    b2 = uniform(ks[3], (1, hidden), hidden)
    w3 = uniform(ks[4], (hidden, 1), hidden)
    b3 = uniform(ks[5], (1, 1), hidden)
    return (w1, b1, w2, b2, w3, b3)


def critic_ref(x, params):
    """Pure-JAX reference of the PyTorch forward."""
    w1, b1, w2, b2, w3, b3 = params
    h1 = jax.nn.relu(x @ w1 + b1)
    h2 = jax.nn.relu(h1 @ w2 + b2)
    return h2 @ w3 + b3


if __name__ == "__main__":
    key = jax.random.PRNGKey(0)
    k_param, k_x = jax.random.split(key)

    batch, state_dim = 1024, 32          # 2 grid steps at batch_tile=512
    params = init_params(k_param, state_dim)
    x = jax.random.normal(k_x, (batch, state_dim), jnp.float32)

    out = critic_forward(x, params, batch_tile=512)
    out = jax.block_until_ready(out)

    ref = critic_ref(x, params)
    assert out.shape == (batch, 1)
    assert jnp.allclose(out, ref, atol=1e-4, rtol=1e-4), "mismatch vs reference"

    print("KERNEL_OK")
</pallas_src>

<mosaic_0001>
module attributes {stable_mosaic.version = 11 : i64} {
  func.func @critic_kernel(%arg0: i32, %arg1: memref<512x32xf32, #tpu.memory_space<vmem>>, %arg2: memref<32x128xf32, #tpu.memory_space<vmem>>, %arg3: memref<1x128xf32, #tpu.memory_space<vmem>>, %arg4: memref<128x128xf32, #tpu.memory_space<vmem>>, %arg5: memref<1x128xf32, #tpu.memory_space<vmem>>, %arg6: memref<1x128xf32, #tpu.memory_space<vmem>>, %arg7: memref<1x1xf32, #tpu.memory_space<vmem>>, %arg8: memref<1x512xf32, #tpu.memory_space<vmem>>) attributes {dimension_semantics = [#tpu.dimension_semantics<parallel>], iteration_bounds = array<i64: 2>, scalar_prefetch = 0 : i64, scratch_operands = 0 : i64, tpu.core_type = #tpu.core_type<tc>, window_params = [{transform_indices = @transform_0, window_bounds = array<i64: 512, 32>}, {pipeline_mode = #tpu.pipeline_mode<synchronous>, transform_indices = @transform_1, window_bounds = array<i64: 32, 128>}, {pipeline_mode = #tpu.pipeline_mode<synchronous>, transform_indices = @transform_2, window_bounds = array<i64: 1, 128>}, {pipeline_mode = #tpu.pipeline_mode<synchronous>, transform_indices = @transform_3, window_bounds = array<i64: 128, 128>}, {pipeline_mode = #tpu.pipeline_mode<synchronous>, transform_indices = @transform_4, window_bounds = array<i64: 1, 128>}, {pipeline_mode = #tpu.pipeline_mode<synchronous>, transform_indices = @transform_5, window_bounds = array<i64: 1, 128>}, {pipeline_mode = #tpu.pipeline_mode<synchronous>, transform_indices = @transform_6, window_bounds = array<i64: 1, 1>}, {transform_indices = @transform_7, window_bounds = array<i64: 1, 512>}]} {
    %c0 = arith.constant 0 : index
    %c0_0 = arith.constant 0 : index
    %0 = vector.load %arg1[%c0, %c0_0] : memref<512x32xf32, #tpu.memory_space<vmem>>, vector<512x32xf32>
    %c0_1 = arith.constant 0 : index
    %c0_2 = arith.constant 0 : index
    %1 = vector.load %arg2[%c0_1, %c0_2] : memref<32x128xf32, #tpu.memory_space<vmem>>, vector<32x128xf32>
    %cst = arith.constant dense<0.000000e+00> : vector<512x128xf32>
    %2 = tpu.matmul %0, %1, %cst {dimension_numbers = #tpu.dot_dimension_numbers<[1], [0], [0], [1], [0, 0, 1, 1], [], []>} : vector<512x32xf32>, vector<32x128xf32>, vector<512x128xf32> -> vector<512x128xf32>
    %c0_3 = arith.constant 0 : index
    %c0_4 = arith.constant 0 : index
    %3 = vector.load %arg3[%c0_3, %c0_4] : memref<1x128xf32, #tpu.memory_space<vmem>>, vector<1x128xf32>
    %4 = vector.broadcast %3 : vector<1x128xf32> to vector<512x128xf32>
    %5 = arith.addf %2, %4 : vector<512x128xf32>
    %cst_5 = arith.constant 0.000000e+00 : f32
    %6 = vector.broadcast %cst_5 : f32 to vector<512x128xf32>
    %7 = arith.maximumf %5, %6 : vector<512x128xf32>
    %c0_6 = arith.constant 0 : index
    %c0_7 = arith.constant 0 : index
    %8 = vector.load %arg4[%c0_6, %c0_7] : memref<128x128xf32, #tpu.memory_space<vmem>>, vector<128x128xf32>
    %cst_8 = arith.constant dense<0.000000e+00> : vector<512x128xf32>
    %9 = tpu.matmul %7, %8, %cst_8 {dimension_numbers = #tpu.dot_dimension_numbers<[1], [0], [0], [1], [0, 0, 1, 1], [], []>} : vector<512x128xf32>, vector<128x128xf32>, vector<512x128xf32> -> vector<512x128xf32>
    %c0_9 = arith.constant 0 : index
    %c0_10 = arith.constant 0 : index
    %10 = vector.load %arg5[%c0_9, %c0_10] : memref<1x128xf32, #tpu.memory_space<vmem>>, vector<1x128xf32>
    %11 = vector.broadcast %10 : vector<1x128xf32> to vector<512x128xf32>
    %12 = arith.addf %9, %11 : vector<512x128xf32>
    %cst_11 = arith.constant 0.000000e+00 : f32
    %13 = vector.broadcast %cst_11 : f32 to vector<512x128xf32>
    %14 = arith.maximumf %12, %13 : vector<512x128xf32>
    %c0_12 = arith.constant 0 : index
    %c0_13 = arith.constant 0 : index
    %15 = vector.load %arg6[%c0_12, %c0_13] : memref<1x128xf32, #tpu.memory_space<vmem>>, vector<1x128xf32>
    %16 = vector.broadcast %15 : vector<1x128xf32> to vector<512x128xf32>
    %17 = arith.mulf %14, %16 : vector<512x128xf32>
    %cst_14 = arith.constant dense<0.000000e+00> : vector<512xf32>
    %18 = vector.multi_reduction <add>, %17, %cst_14 [1] : vector<512x128xf32> to vector<512xf32>
    %19 = vector.shape_cast %18 : vector<512xf32> to vector<1x512xf32>
    %c0_15 = arith.constant 0 : index
    %c0_16 = arith.constant 0 : index
    %20 = vector.load %arg7[%c0_15, %c0_16] : memref<1x1xf32, #tpu.memory_space<vmem>>, vector<1x1xf32>
    %21 = vector.broadcast %20 : vector<1x1xf32> to vector<1x512xf32>
    %22 = arith.addf %19, %21 : vector<1x512xf32>
    %c0_17 = arith.constant 0 : index
    %c0_18 = arith.constant 0 : index
    %23 = vector.load %arg8[%c0_17, %c0_18] : memref<1x512xf32, #tpu.memory_space<vmem>>, vector<1x512xf32>
    tpu.vector_store %arg8[%c0_17, %c0_18], %22 {strides = array<i32>} : memref<1x512xf32, #tpu.memory_space<vmem>>, vector<1x512xf32>,
    return
  }
  func.func @transform_0(%arg0: i32) -> (i32, i32) {
    %c0_i32 = arith.constant 0 : i32
    %c0_i32_0 = arith.constant 0 : i32
    return %arg0, %c0_i32 : i32, i32
  }
  func.func @transform_1(%arg0: i32) -> (i32, i32) {
    %c0_i32 = arith.constant 0 : i32
    %c0_i32_0 = arith.constant 0 : i32
    %c0_i32_1 = arith.constant 0 : i32
    return %c0_i32, %c0_i32_0 : i32, i32
  }
  func.func @transform_2(%arg0: i32) -> (i32, i32) {
    %c0_i32 = arith.constant 0 : i32
    %c0_i32_0 = arith.constant 0 : i32
    %c0_i32_1 = arith.constant 0 : i32
    return %c0_i32, %c0_i32_0 : i32, i32
  }
  func.func @transform_3(%arg0: i32) -> (i32, i32) {
    %c0_i32 = arith.constant 0 : i32
    %c0_i32_0 = arith.constant 0 : i32
    %c0_i32_1 = arith.constant 0 : i32
    return %c0_i32, %c0_i32_0 : i32, i32
  }
  func.func @transform_4(%arg0: i32) -> (i32, i32) {
    %c0_i32 = arith.constant 0 : i32
    %c0_i32_0 = arith.constant 0 : i32
    %c0_i32_1 = arith.constant 0 : i32
    return %c0_i32, %c0_i32_0 : i32, i32
  }
  func.func @transform_5(%arg0: i32) -> (i32, i32) {
    %c0_i32 = arith.constant 0 : i32
    %c0_i32_0 = arith.constant 0 : i32
    %c0_i32_1 = arith.constant 0 : i32
    return %c0_i32, %c0_i32_0 : i32, i32
  }
  func.func @transform_6(%arg0: i32) -> (i32, i32) {
    %c0_i32 = arith.constant 0 : i32
    %c0_i32_0 = arith.constant 0 : i32
    %c0_i32_1 = arith.constant 0 : i32
    return %c0_i32, %c0_i32_0 : i32, i32
  }
  func.func @transform_7(%arg0: i32) -> (i32, i32) {
    %c0_i32 = arith.constant 0 : i32
    %c0_i32_0 = arith.constant 0 : i32
    return %c0_i32, %arg0 : i32, i32
  }
}

</mosaic_0001>

<llo_original>
// kernel: tpu_custom_call.1
$region0: #{tpu_custom_call.1}
  #allocation0 [shape = 'u32[]', space=smem, size = 0x4, offset = 0x4, fixed_abs, tag = 'smem constant byte address 0x4 - core index']
  #allocation1 [shape = 'u32[72,128]{1,0:T(1,128)}', space=vmem, size = 0x9000, scoped, tag = 'internal scratch']
  #allocation2 [shape = 'f32[1,1]{1,0:T(1,128)S(1)}', space=vmem, size = 0x200, scoped, tag = 'scoped memory for tpu_custom_call.1']
  %s0 = inlined_call_operand.vmem [shape: f32[1024,32], index: 0, kind: input, shape index: {}]
  %s1 = inlined_call_operand.vmem [shape: f32[32,128], index: 1, kind: input, shape index: {}]
  %s2 = inlined_call_operand.vmem [shape: f32[1,128], index: 2, kind: input, shape index: {}]
  %s3 = inlined_call_operand.vmem [shape: f32[128,128], index: 3, kind: input, shape index: {}]
  %s4 = inlined_call_operand.vmem [shape: f32[1,128], index: 4, kind: input, shape index: {}]
  %s5 = inlined_call_operand.vmem [shape: f32[1,128], index: 5, kind: input, shape index: {}]
  %s6 = inlined_call_operand.<no memory space> [shape: f32[1,1], index: 6, kind: input, shape index: {}]
  %s7 = inlined_call_operand.hbm [shape: f32[1,1024], index: 7, kind: output, shape index: {}]
  %s8 = sld [smem:[#allocation0]]
  $region61: #{tpu_custom_call.1} parent=0
    _
  %s10 = ssub.s32 1, %s8
  %s11 = scalar_select 0, %s10, %s8
  %v12 = vstv %s6
  %13 = vst [vmem:[#allocation2] sm:$0x1] %v12
  $region1: #{tpu_custom_call.1} parent=0
    #allocation3 [shape = 'u8[4096]{0}', space=vmem, size = 0x1000, scoped, tag = 'output window, operand 0']
    #allocation4 [shape = 's32[2]{0}', space=sflag, size = 0x8, scoped, tag = 'scoped memory for tpu_custom_call.1']
    %14 = vsyncpa [#allocation4], 0
    %s15 = scalar_lea.sflag [#allocation4], 1
    %16 = vsyncpa %s15, 0
    loop: start=0, step=1, limit=4
    $region2: #{tpu_custom_call.1} parent=1 // loop_pre_header
      _
    $region3: #{tpu_custom_call.1} parent=1 // loop_header
      %s18 = sphi 0, %s22
      %p19 = scmp.ge.s32.totalorder %s18, 4
      %s28 = sphi 0, %s30
      %s31 = sphi 0, %s28
      %s32 = sphi 0, %s31
      %s48 = sphi 0, %s32
      %s52 = sphi 0, %s52
      %s54 = sphi 0, %s52
      %s55 = sphi 0, %s54
      %s69 = sphi 0, %s55
      %s73 = sphi 0, %s73
      %s75 = sphi 0, %s73
      %s76 = sphi 0, %s75
      %s90 = sphi 0, %s76
      %s94 = sphi 0, %s94
      %s96 = sphi 0, %s94
      %s97 = sphi 0, %s96
      %s111 = sphi 0, %s97
      %s115 = sphi 0, %s115
      %s117 = sphi 0, %s115
      %s118 = sphi 0, %s117
      %s132 = sphi 0, %s118
      %s136 = sphi 0, %s136
      %s138 = sphi 0, %s136
      %s139 = sphi 0, %s138
      %s153 = sphi 0, %s139
      %s157 = sphi 0, %s157
      %s159 = sphi 0, %s157
      %s160 = sphi 0, %s159
      %s174 = sphi 0, %s160
      %s180 = sphi 0, %s182
      %s183 = sphi 0, %s180
      %s184 = sphi 0, %s183
      %s200 = sphi 0, %s184
    $region4: #{tpu_custom_call.1} parent=1 // loop_header_branch
      %21 = sbr.rel (%p19) target = $region8
    $region5: #{tpu_custom_call.1} parent=1 // loop_body
      %s23 = ssub.s32 %s18, 1
      %s24 = ssub.s32 %s18, 2
      %s25 = sadd.s32 %s18, 1
      %s26 = ssub.s32 %s18, %s25
      %p27 = scmp.eq.s32.totalorder %s26, 0
      %s29 = sadd.s32 %s28, 1
      %s30 = scalar_select %p27, %s28, %s29
      %p33 = pneg %p27
      %p34 = scmp.eq.s32.totalorder %s18, 1
      %p35 = por %p33, %p34
      %p36 = scmp.ne.s32.totalorder %s28, %s31
      %p37 = scmp.eq.s32.totalorder %s18, 0
      %p38 = por %p36, %p37
      %p39 = scmp.ne.s32.totalorder %s28, %s31
      %p40 = scmp.eq.s32.totalorder %s23, 1
      %p41 = por %p39, %p40
      %p42 = scmp.ne.s32.totalorder %s31, %s32
      %p43 = scmp.eq.s32.totalorder %s23, 0
      %p44 = por %p42, %p43
      %p45 = scmp.ne.s32.totalorder %s31, %s32
      %p46 = scmp.eq.s32.totalorder %s24, 1
      %p47 = por %p45, %p46
      %p49 = scmp.ne.s32.totalorder %s32, %s48
      %p50 = scmp.eq.s32.totalorder %s24, 0
      %p51 = por %p49, %p50
      %s53 = sadd.s32 %s52, 1
      %p56 = scmp.eq.s32.totalorder %s18, 1
      %p57 = scmp.ne.s32.totalorder %s52, %s54
      %p58 = scmp.eq.s32.totalorder %s18, 0
      %p59 = por %p57, %p58
      %p60 = scmp.ne.s32.totalorder %s52, %s54
      %p61 = scmp.eq.s32.totalorder %s23, 1
      %p62 = por %p60, %p61
      %p63 = scmp.ne.s32.totalorder %s54, %s55
      %p64 = scmp.eq.s32.totalorder %s23, 0
      %p65 = por %p63, %p64
      %p66 = scmp.ne.s32.totalorder %s54, %s55
      %p67 = scmp.eq.s32.totalorder %s24, 1
      %p68 = por %p66, %p67
      %p70 = scmp.ne.s32.totalorder %s55, %s69
      %p71 = scmp.eq.s32.totalorder %s24, 0
      %p72 = por %p70, %p71
      %s74 = sadd.s32 %s73, 1
      %p77 = scmp.eq.s32.totalorder %s18, 1
      %p78 = scmp.ne.s32.totalorder %s73, %s75
      %p79 = scmp.eq.s32.totalorder %s18, 0
      %p80 = por %p78, %p79
      %p81 = scmp.ne.s32.totalorder %s73, %s75
      %p82 = scmp.eq.s32.totalorder %s23, 1
      %p83 = por %p81, %p82
      %p84 = scmp.ne.s32.totalorder %s75, %s76
      %p85 = scmp.eq.s32.totalorder %s23, 0
      %p86 = por %p84, %p85
      %p87 = scmp.ne.s32.totalorder %s75, %s76
      %p88 = scmp.eq.s32.totalorder %s24, 1
      %p89 = por %p87, %p88
      %p91 = scmp.ne.s32.totalorder %s76, %s90
      %p92 = scmp.eq.s32.totalorder %s24, 0
      %p93 = por %p91, %p92
      %s95 = sadd.s32 %s94, 1
      %p98 = scmp.eq.s32.totalorder %s18, 1
      %p99 = scmp.ne.s32.totalorder %s94, %s96
      %p100 = scmp.eq.s32.totalorder %s18, 0
      %p101 = por %p99, %p100
      %p102 = scmp.ne.s32.totalorder %s94, %s96
      %p103 = scmp.eq.s32.totalorder %s23, 1
      %p104 = por %p102, %p103
      %p105 = scmp.ne.s32.totalorder %s96, %s97
      %p106 = scmp.eq.s32.totalorder %s23, 0
      %p107 = por %p105, %p106
      %p108 = scmp.ne.s32.totalorder %s96, %s97
      %p109 = scmp.eq.s32.totalorder %s24, 1
      %p110 = por %p108, %p109
      %p112 = scmp.ne.s32.totalorder %s97, %s111
      %p113 = scmp.eq.s32.totalorder %s24, 0
      %p114 = por %p112, %p113
      %s116 = sadd.s32 %s115, 1
      %p119 = scmp.eq.s32.totalorder %s18, 1
      %p120 = scmp.ne.s32.totalorder %s115, %s117
      %p121 = scmp.eq.s32.totalorder %s18, 0
      %p122 = por %p120, %p121
      %p123 = scmp.ne.s32.totalorder %s115, %s117
      %p124 = scmp.eq.s32.totalorder %s23, 1
      %p125 = por %p123, %p124
      %p126 = scmp.ne.s32.totalorder %s117, %s118
      %p127 = scmp.eq.s32.totalorder %s23, 0
      %p128 = por %p126, %p127
      %p129 = scmp.ne.s32.totalorder %s117, %s118
      %p130 = scmp.eq.s32.totalorder %s24, 1
      %p131 = por %p129, %p130
      %p133 = scmp.ne.s32.totalorder %s118, %s132
      %p134 = scmp.eq.s32.totalorder %s24, 0
      %p135 = por %p133, %p134
      %s137 = sadd.s32 %s136, 1
      %p140 = scmp.eq.s32.totalorder %s18, 1
      %p141 = scmp.ne.s32.totalorder %s136, %s138
      %p142 = scmp.eq.s32.totalorder %s18, 0
      %p143 = por %p141, %p142
      %p144 = scmp.ne.s32.totalorder %s136, %s138
      %p145 = scmp.eq.s32.totalorder %s23, 1
      %p146 = por %p144, %p145
      %p147 = scmp.ne.s32.totalorder %s138, %s139
      %p148 = scmp.eq.s32.totalorder %s23, 0
      %p149 = por %p147, %p148
      %p150 = scmp.ne.s32.totalorder %s138, %s139
      %p151 = scmp.eq.s32.totalorder %s24, 1
      %p152 = por %p150, %p151
      %p154 = scmp.ne.s32.totalorder %s139, %s153
      %p155 = scmp.eq.s32.totalorder %s24, 0
      %p156 = por %p154, %p155
      %s158 = sadd.s32 %s157, 1
      %p161 = scmp.eq.s32.totalorder %s18, 1
      %p162 = scmp.ne.s32.totalorder %s157, %s159
      %p163 = scmp.eq.s32.totalorder %s18, 0
      %p164 = por %p162, %p163
      %p165 = scmp.ne.s32.totalorder %s157, %s159
      %p166 = scmp.eq.s32.totalorder %s23, 1
      %p167 = por %p165, %p166
      %p168 = scmp.ne.s32.totalorder %s159, %s160
      %p169 = scmp.eq.s32.totalorder %s23, 0
      %p170 = por %p168, %p169
      %p171 = scmp.ne.s32.totalorder %s159, %s160
      %p172 = scmp.eq.s32.totalorder %s24, 1
      %p173 = por %p171, %p172
      %p175 = scmp.ne.s32.totalorder %s160, %s174
      %p176 = scmp.eq.s32.totalorder %s24, 0
      %p177 = por %p175, %p176
      %s178 = ssub.s32 %s18, %s25
      %p179 = scmp.eq.s32.totalorder %s178, 0
      %s181 = sadd.s32 %s180, 1
      %s182 = scalar_select %p179, %s180, %s181
      %p185 = pneg %p179
      %p186 = scmp.eq.s32.totalorder %s18, 1
      %p187 = por %p185, %p186
      %p188 = scmp.ne.s32.totalorder %s180, %s183
      %p189 = scmp.eq.s32.totalorder %s18, 0
      %p190 = por %p188, %p189
      %p191 = scmp.ne.s32.totalorder %s180, %s183
      %p192 = scmp.eq.s32.totalorder %s23, 1
      %p193 = por %p191, %p192
      %p194 = scmp.ne.s32.totalorder %s183, %s184
      %p195 = scmp.eq.s32.totalorder %s23, 0
      %p196 = por %p194, %p195
      %p197 = scmp.ne.s32.totalorder %s183, %s184
      %p198 = scmp.eq.s32.totalorder %s24, 1
      %p199 = por %p197, %p198
      %p201 = scmp.ne.s32.totalorder %s184, %s200
      %p202 = scmp.eq.s32.totalorder %s24, 0
      %p203 = por %p201, %p202
      %p204 = scmp.le.s32.totalorder 1, %s18
      %p205 = scmp.lt.s32.totalorder %s18, 3
      %p206 = pnand %p204, %p205
      %p207 = pneg %p206
      // Predicated region
      $region9: #{tpu_custom_call.1} parent=5 // pred_check
        _
      $region10: #{tpu_custom_call.1} parent=5 // pred_check_branch
        %209 = sbr.rel (%p206) target = $region12
      $region11: #{tpu_custom_call.1} parent=5 // pred_region
        %s210 = ssub.s32 %s18, 1
        // Predicated region
        $region13: #{tpu_custom_call.1} parent=11 // pred_check
          %p211 = pneg %p65
        $region14: #{tpu_custom_call.1} parent=11 // pred_check_branch
          %213 = sbr.rel (%p211) target = $region16
        $region15: #{tpu_custom_call.1} parent=11 // pred_region
          _
        $region16: #{tpu_custom_call.1} parent=11 // pred_fallthru
          _
        // Predicated region
        $region17: #{tpu_custom_call.1} parent=11 // pred_check
          %p214 = pneg %p86
        $region18: #{tpu_custom_call.1} parent=11 // pred_check_branch
          %216 = sbr.rel (%p214) target = $region20
        $region19: #{tpu_custom_call.1} parent=11 // pred_region
          _
        $region20: #{tpu_custom_call.1} parent=11 // pred_fallthru
          _
        // Predicated region
        $region21: #{tpu_custom_call.1} parent=11 // pred_check
          %p217 = pneg %p107
        $region22: #{tpu_custom_call.1} parent=11 // pred_check_branch
          %219 = sbr.rel (%p217) target = $region24
        $region23: #{tpu_custom_call.1} parent=11 // pred_region
          _
        $region24: #{tpu_custom_call.1} parent=11 // pred_fallthru
          _
        // Predicated region
        $region25: #{tpu_custom_call.1} parent=11 // pred_check
          %p220 = pneg %p128
        $region26: #{tpu_custom_call.1} parent=11 // pred_check_branch
          %222 = sbr.rel (%p220) target = $region28
        $region27: #{tpu_custom_call.1} parent=11 // pred_region
          _
        $region28: #{tpu_custom_call.1} parent=11 // pred_fallthru
          _
        // Predicated region
        $region29: #{tpu_custom_call.1} parent=11 // pred_check
          %p223 = pneg %p149
        $region30: #{tpu_custom_call.1} parent=11 // pred_check_branch
          %225 = sbr.rel (%p223) target = $region32
        $region31: #{tpu_custom_call.1} parent=11 // pred_region
          _
        $region32: #{tpu_custom_call.1} parent=11 // pred_fallthru
          _
        // Predicated region
        $region33: #{tpu_custom_call.1} parent=11 // pred_check
          %p226 = pneg %p170
        $region34: #{tpu_custom_call.1} parent=11 // pred_check_branch
          %228 = sbr.rel (%p226) target = $region36
        $region35: #{tpu_custom_call.1} parent=11 // pred_region
          _
        $region36: #{tpu_custom_call.1} parent=11 // pred_fallthru
          _
      $region12: #{tpu_custom_call.1} parent=5 // pred_fallthru
        _
      %p229 = scmp.lt.s32.totalorder %s18, 2
      // Predicated region
      $region37: #{tpu_custom_call.1} parent=5 // pred_check
        %p230 = pneg %p229
      $region38: #{tpu_custom_call.1} parent=5 // pred_check_branch
        %232 = sbr.rel (%p230) target = $region40
      $region39: #{tpu_custom_call.1} parent=5 // pred_region
        // Predicated region
        $region41: #{tpu_custom_call.1} parent=39 // pred_check
          %p233 = pneg %p38
        $region42: #{tpu_custom_call.1} parent=39 // pred_check_branch
          %235 = sbr.rel (%p233) target = $region44
        $region43: #{tpu_custom_call.1} parent=39 // pred_region
          %s236 = smul.u32 64, %s18
          %p237 = scmp.lt.s32.totalorder %s236, 127
          %s238 = scalar_select %p237, %s236, 127
          %s239 = smul.addr %s238, 8
          %s240 = scalar_lea.vmem %s0, %s239
          %s241 = smul.u32 64, %s18
        $region44: #{tpu_custom_call.1} parent=39 // pred_fallthru
          _
      $region40: #{tpu_custom_call.1} parent=5 // pred_fallthru
        _
      %p242 = scmp.le.s32.totalorder 1, %s18
      %p243 = scmp.lt.s32.totalorder %s18, 3
      %p244 = pnand %p242, %p243
      %p245 = pneg %p244
      // Predicated region
      $region45: #{tpu_custom_call.1} parent=5 // pred_check
        _
      $region46: #{tpu_custom_call.1} parent=5 // pred_check_branch
        %247 = sbr.rel (%p244) target = $region48
      $region47: #{tpu_custom_call.1} parent=5 // pred_region
        %s248 = ssub.s32 %s18, 1
        %s249 = smul.u32 64, %s23
        %p250 = scmp.lt.s32.totalorder %s249, 127
        %s251 = scalar_select %p250, %s249, 127
        %s252 = smul.addr %s251, 8
        %s253 = scalar_lea.vmem %s0, %s252
        %p254 = pneg %p44
        %p255 = pneg %p41
        %p256 = pneg %p65
        %p257 = pneg %p62
        %p258 = pneg %p86
        %p259 = pneg %p83
        %p260 = pneg %p107
        %p261 = pneg %p104
        %p262 = pneg %p128
        %p263 = pneg %p125
        %p264 = pneg %p149
        %p265 = pneg %p146
        %p266 = pneg %p170
        %p267 = pneg %p167
        %p268 = pneg %p196
        %p269 = pneg %p193
        %s270 = sand.u32 %s183, 1
        %s271 = scalar_lea.sflag [#allocation4], %s270
        %s272 = sand.u32 %s183, 1
        %s273 = smul.addr %s272, 4
        %s274 = scalar_lea.vmem [#allocation3], %s273
        %s275 = smul.u32 64, %s23
        %p276 = scmp.lt.s32.totalorder %s275, 127
        %s277 = scalar_select %p276, %s275, 127
        %s278 = smul.addr %s277, 8
        %s279 = scalar_lea.vmem %s0, %s278
        %s280 = smul.u32 64, %s23
        %s281 = smul.u32 4, %s23
        %v282 = vld [vmem:[%s279] sm:$0xff]
        %v283 = vld [vmem:[%s279 + $0x8] sm:$0xff]
        %v284 = vld [vmem:[%s279 + $0x10] sm:$0xff]
        %v285 = vld [vmem:[%s279 + $0x18] sm:$0xff]
        %v286 = vld [vmem:[%s279 + $0x20] sm:$0xff]
        %v287 = vld [vmem:[%s279 + $0x28] sm:$0xff]
        %v288 = vld [vmem:[%s279 + $0x30] sm:$0xff]
        %v289 = vld [vmem:[%s279 + $0x38] sm:$0xff]
        %v290 = vld [vmem:[%s279 + $0x40] sm:$0xff]
        %v291 = vld [vmem:[%s279 + $0x48] sm:$0xff]
        %v292 = vld [vmem:[%s279 + $0x50] sm:$0xff]
        %v293 = vld [vmem:[%s279 + $0x58] sm:$0xff]
        %v294 = vld [vmem:[%s279 + $0x60] sm:$0xff]
        %v295 = vld [vmem:[%s279 + $0x68] sm:$0xff]
        %v296 = vld [vmem:[%s279 + $0x70] sm:$0xff]
        %v297 = vld [vmem:[%s279 + $0x78] sm:$0xff]
        %v298 = vld [vmem:[%s279 + $0x80] sm:$0xff]
        %v299 = vld [vmem:[%s279 + $0x88] sm:$0xff]
        %v300 = vld [vmem:[%s279 + $0x90] sm:$0xff]
        %v301 = vld [vmem:[%s279 + $0x98] sm:$0xff]
        %v302 = vld [vmem:[%s279 + $0xa0] sm:$0xff]
        %v303 = vld [vmem:[%s279 + $0xa8] sm:$0xff]
        %v304 = vld [vmem:[%s279 + $0xb0] sm:$0xff]
        %v305 = vld [vmem:[%s279 + $0xb8] sm:$0xff]
        %v306 = vld [vmem:[%s279 + $0xc0] sm:$0xff]
        %v307 = vld [vmem:[%s279 + $0xc8] sm:$0xff]
        %v308 = vld [vmem:[%s279 + $0xd0] sm:$0xff]
        %v309 = vld [vmem:[%s279 + $0xd8] sm:$0xff]
        %v310 = vld [vmem:[%s279 + $0xe0] sm:$0xff]
        %v311 = vld [vmem:[%s279 + $0xe8] sm:$0xff]
        %v312 = vld [vmem:[%s279 + $0xf0] sm:$0xff]
        %v313 = vld [vmem:[%s279 + $0xf8] sm:$0xff]
        %v314 = vld [vmem:[%s279 + $0x100] sm:$0xff]
        %v315 = vld [vmem:[%s279 + $0x108] sm:$0xff]
        %v316 = vld [vmem:[%s279 + $0x110] sm:$0xff]
        %v317 = vld [vmem:[%s279 + $0x118] sm:$0xff]
        %v318 = vld [vmem:[%s279 + $0x120] sm:$0xff]
        %v319 = vld [vmem:[%s279 + $0x128] sm:$0xff]
        %v320 = vld [vmem:[%s279 + $0x130] sm:$0xff]
        %v321 = vld [vmem:[%s279 + $0x138] sm:$0xff]
        %v322 = vld [vmem:[%s279 + $0x140] sm:$0xff]
        %v323 = vld [vmem:[%s279 + $0x148] sm:$0xff]
        %v324 = vld [vmem:[%s279 + $0x150] sm:$0xff]
        %v325 = vld [vmem:[%s279 + $0x158] sm:$0xff]
        %v326 = vld [vmem:[%s279 + $0x160] sm:$0xff]
        %v327 = vld [vmem:[%s279 + $0x168] sm:$0xff]
        %v328 = vld [vmem:[%s279 + $0x170] sm:$0xff]
        %v329 = vld [vmem:[%s279 + $0x178] sm:$0xff]
        %v330 = vld [vmem:[%s279 + $0x180] sm:$0xff]
        %v331 = vld [vmem:[%s279 + $0x188] sm:$0xff]
        %v332 = vld [vmem:[%s279 + $0x190] sm:$0xff]
        %v333 = vld [vmem:[%s279 + $0x198] sm:$0xff]
        %v334 = vld [vmem:[%s279 + $0x1a0] sm:$0xff]
        %v335 = vld [vmem:[%s279 + $0x1a8] sm:$0xff]
        %v336 = vld [vmem:[%s279 + $0x1b0] sm:$0xff]
        %v337 = vld [vmem:[%s279 + $0x1b8] sm:$0xff]
        %v338 = vld [vmem:[%s279 + $0x1c0] sm:$0xff]
        %v339 = vld [vmem:[%s279 + $0x1c8] sm:$0xff]
        %v340 = vld [vmem:[%s279 + $0x1d0] sm:$0xff]
        %v341 = vld [vmem:[%s279 + $0x1d8] sm:$0xff]
        %v342 = vld [vmem:[%s279 + $0x1e0] sm:$0xff]
        %v343 = vld [vmem:[%s279 + $0x1e8] sm:$0xff]
        %v344 = vld [vmem:[%s279 + $0x1f0] sm:$0xff]
        %v345 = vld [vmem:[%s279 + $0x1f8] sm:$0xff]
        %v346 = vld [vmem:[%s1] sm:$0xff]
        %v347 = vld [vmem:[%s1 + $0x8] sm:$0xff]
        %v348 = vld [vmem:[%s1 + $0x10] sm:$0xff]
        %v349 = vld [vmem:[%s1 + $0x18] sm:$0xff]
        %v350 = vld [vmem:[%s2] sm:$0x1]
        %v352 = vperm.slane %v350, 0
        %vm354 = vcmask 261120
        %v356 = vsel %vm354, %v282, 0
        %v359 = vsel %vm354, %v283, 0
        %v362 = vsel %vm354, %v284, 0
        %v365 = vsel %vm354, %v285, 0
        %v368 = vsel %vm354, %v286, 0
        %v371 = vsel %vm354, %v287, 0
        %v374 = vsel %vm354, %v288, 0
        %v377 = vsel %vm354, %v289, 0
        %v380 = vsel %vm354, %v290, 0
        %v383 = vsel %vm354, %v291, 0
        %v386 = vsel %vm354, %v292, 0
        %v389 = vsel %vm354, %v293, 0
        %v392 = vsel %vm354, %v294, 0
        %v395 = vsel %vm354, %v295, 0
        %v398 = vsel %vm354, %v296, 0
        %v401 = vsel %vm354, %v297, 0
        %v404 = vsel %vm354, %v298, 0
        %v407 = vsel %vm354, %v299, 0
        %v410 = vsel %vm354, %v300, 0
        %v413 = vsel %vm354, %v301, 0
        %v416 = vsel %vm354, %v302, 0
        %v419 = vsel %vm354, %v303, 0
        %v422 = vsel %vm354, %v304, 0
        %v425 = vsel %vm354, %v305, 0
        %v428 = vsel %vm354, %v306, 0
        %v431 = vsel %vm354, %v307, 0
        %v434 = vsel %vm354, %v308, 0
        %v437 = vsel %vm354, %v309, 0
        %v440 = vsel %vm354, %v310, 0
        %v443 = vsel %vm354, %v311, 0
        %v446 = vsel %vm354, %v312, 0
        %v449 = vsel %vm354, %v313, 0
        %v452 = vsel %vm354, %v314, 0
        %v455 = vsel %vm354, %v315, 0
        %v458 = vsel %vm354, %v316, 0
        %v461 = vsel %vm354, %v317, 0
        %v464 = vsel %vm354, %v318, 0
        %v467 = vsel %vm354, %v319, 0
        %v470 = vsel %vm354, %v320, 0
        %v473 = vsel %vm354, %v321, 0
        %v476 = vsel %vm354, %v322, 0
        %v479 = vsel %vm354, %v323, 0
        %v482 = vsel %vm354, %v324, 0
        %v485 = vsel %vm354, %v325, 0
        %v488 = vsel %vm354, %v326, 0
        %v491 = vsel %vm354, %v327, 0
        %v494 = vsel %vm354, %v328, 0
        %v497 = vsel %vm354, %v329, 0
        %v500 = vsel %vm354, %v330, 0
        %v503 = vsel %vm354, %v331, 0
        %v506 = vsel %vm354, %v332, 0
        %v509 = vsel %vm354, %v333, 0
        %v512 = vsel %vm354, %v334, 0
        %v515 = vsel %vm354, %v335, 0
        %v518 = vsel %vm354, %v336, 0
        %v521 = vsel %vm354, %v337, 0
        %v524 = vsel %vm354, %v338, 0
        %v527 = vsel %vm354, %v339, 0
        %v530 = vsel %vm354, %v340, 0
        %v533 = vsel %vm354, %v341, 0
        %v536 = vsel %vm354, %v342, 0
        %v539 = vsel %vm354, %v343, 0
        %v542 = vsel %vm354, %v344, 0
        %v545 = vsel %vm354, %v345, 0
        %547 = vmatpush.msra.mxu0 0.0
        %548 = vmatpush.msra.mxu0 0.0
        %549 = vmatpush.msra.mxu0 0.0
        %550 = vmatpush.msra.mxu0 0.0
        %551 = vmatpush.msra.mxu0 0.0
        %552 = vmatpush.msra.mxu0 0.0
        %553 = vmatpush.msra.mxu0 0.0
        %554 = vmatpush.msra.mxu0 0.0
        %555 = vmatpush.msra.mxu0 0.0
        %556 = vmatpush.msra.mxu0 0.0
        %557 = vmatpush.msra.mxu0 0.0
        %558 = vmatpush.msra.mxu0 0.0
        %559 = vmatpush.msra.mxu0 %v349
        %560 = vmatpush.msra.mxu0 %v348
        %561 = vmatpush.msra.mxu0 %v347
        %562 = vmatpush.msra.mxu0 %v346
        %563 = vmatmul.f32.gmra.mxu0 %v356
        %v564 = vpop.f32.mrf.mxu0
        %v565 = vadd.f32 %v352, %v564
        %566 = vmatmul.f32.gmra.mxu0 %v359
        %v567 = vpop.f32.mrf.mxu0
        %v568 = vadd.f32 %v352, %v567
        %569 = vmatmul.f32.gmra.mxu0 %v362
        %v570 = vpop.f32.mrf.mxu0
        %v571 = vadd.f32 %v352, %v570
        %572 = vmatmul.f32.gmra.mxu0 %v365
        %v573 = vpop.f32.mrf.mxu0
        %v574 = vadd.f32 %v352, %v573
        %575 = vmatmul.f32.gmra.mxu0 %v368
        %v576 = vpop.f32.mrf.mxu0
        %v577 = vadd.f32 %v352, %v576
        %578 = vmatmul.f32.gmra.mxu0 %v371
        %v579 = vpop.f32.mrf.mxu0
        %v580 = vadd.f32 %v352, %v579
        %581 = vmatmul.f32.gmra.mxu0 %v374
        %v582 = vpop.f32.mrf.mxu0
        %v583 = vadd.f32 %v352, %v582
        %584 = vmatmul.f32.gmra.mxu0 %v377
        %v585 = vpop.f32.mrf.mxu0
        %v586 = vadd.f32 %v352, %v585
        %587 = vmatmul.f32.gmra.mxu0 %v380
        %v588 = vpop.f32.mrf.mxu0
        %v589 = vadd.f32 %v352, %v588
        %590 = vmatmul.f32.gmra.mxu0 %v383
        %v591 = vpop.f32.mrf.mxu0
        %v592 = vadd.f32 %v352, %v591
        %593 = vmatmul.f32.gmra.mxu0 %v386
        %v594 = vpop.f32.mrf.mxu0
        %v595 = vadd.f32 %v352, %v594
        %596 = vmatmul.f32.gmra.mxu0 %v389
        %v597 = vpop.f32.mrf.mxu0
        %v598 = vadd.f32 %v352, %v597
        %599 = vmatmul.f32.gmra.mxu0 %v392
        %v600 = vpop.f32.mrf.mxu0
        %v601 = vadd.f32 %v352, %v600
        %602 = vmatmul.f32.gmra.mxu0 %v395
        %v603 = vpop.f32.mrf.mxu0
        %v604 = vadd.f32 %v352, %v603
        %605 = vmatmul.f32.gmra.mxu0 %v398
        %v606 = vpop.f32.mrf.mxu0
        %v607 = vadd.f32 %v352, %v606
        %608 = vmatmul.f32.gmra.mxu0 %v401
        %v609 = vpop.f32.mrf.mxu0
        %v610 = vadd.f32 %v352, %v609
        %611 = vmatmul.f32.gmra.mxu0 %v404
        %v612 = vpop.f32.mrf.mxu0
        %v613 = vadd.f32 %v352, %v612
        %614 = vmatmul.f32.gmra.mxu0 %v407
        %v615 = vpop.f32.mrf.mxu0
        %v616 = vadd.f32 %v352, %v615
        %617 = vmatmul.f32.gmra.mxu0 %v410
        %v618 = vpop.f32.mrf.mxu0
        %v619 = vadd.f32 %v352, %v618
        %620 = vmatmul.f32.gmra.mxu0 %v413
        %v621 = vpop.f32.mrf.mxu0
        %v622 = vadd.f32 %v352, %v621
        %623 = vmatmul.f32.gmra.mxu0 %v416
        %v624 = vpop.f32.mrf.mxu0
        %v625 = vadd.f32 %v352, %v624
        %626 = vmatmul.f32.gmra.mxu0 %v419
        %v627 = vpop.f32.mrf.mxu0
        %v628 = vadd.f32 %v352, %v627
        %629 = vmatmul.f32.gmra.mxu0 %v422
        %v630 = vpop.f32.mrf.mxu0
        %v631 = vadd.f32 %v352, %v630
        %632 = vmatmul.f32.gmra.mxu0 %v425
        %v633 = vpop.f32.mrf.mxu0
        %v634 = vadd.f32 %v352, %v633
        %635 = vmatmul.f32.gmra.mxu0 %v428
        %v636 = vpop.f32.mrf.mxu0
        %v637 = vadd.f32 %v352, %v636
        %638 = vmatmul.f32.gmra.mxu0 %v431
        %v639 = vpop.f32.mrf.mxu0
        %v640 = vadd.f32 %v352, %v639
        %641 = vmatmul.f32.gmra.mxu0 %v434
        %v642 = vpop.f32.mrf.mxu0
        %v643 = vadd.f32 %v352, %v642
        %644 = vmatmul.f32.gmra.mxu0 %v437
        %v645 = vpop.f32.mrf.mxu0
        %v646 = vadd.f32 %v352, %v645
        %647 = vmatmul.f32.gmra.mxu0 %v440
        %v648 = vpop.f32.mrf.mxu0
        %v649 = vadd.f32 %v352, %v648
        %650 = vmatmul.f32.gmra.mxu0 %v443
        %v651 = vpop.f32.mrf.mxu0
        %v652 = vadd.f32 %v352, %v651
        %653 = vmatmul.f32.gmra.mxu0 %v446
        %v654 = vpop.f32.mrf.mxu0
        %v655 = vadd.f32 %v352, %v654
        %656 = vmatmul.f32.gmra.mxu0 %v449
        %v657 = vpop.f32.mrf.mxu0
        %v658 = vadd.f32 %v352, %v657
        %659 = vmatmul.f32.gmra.mxu0 %v452
        %v660 = vpop.f32.mrf.mxu0
        %v661 = vadd.f32 %v352, %v660
        %662 = vmatmul.f32.gmra.mxu0 %v455
        %v663 = vpop.f32.mrf.mxu0
        %v664 = vadd.f32 %v352, %v663
        %665 = vmatmul.f32.gmra.mxu0 %v458
        %v666 = vpop.f32.mrf.mxu0
        %v667 = vadd.f32 %v352, %v666
        %668 = vmatmul.f32.gmra.mxu0 %v461
        %v669 = vpop.f32.mrf.mxu0
        %v670 = vadd.f32 %v352, %v669
        %671 = vmatmul.f32.gmra.mxu0 %v464
        %v672 = vpop.f32.mrf.mxu0
        %v673 = vadd.f32 %v352, %v672
        %674 = vmatmul.f32.gmra.mxu0 %v467
        %v675 = vpop.f32.mrf.mxu0
        %v676 = vadd.f32 %v352, %v675
        %677 = vmatmul.f32.gmra.mxu0 %v470
        %v678 = vpop.f32.mrf.mxu0
        %v679 = vadd.f32 %v352, %v678
        %680 = vmatmul.f32.gmra.mxu0 %v473
        %v681 = vpop.f32.mrf.mxu0
        %v682 = vadd.f32 %v352, %v681
        %683 = vmatmul.f32.gmra.mxu0 %v476
        %v684 = vpop.f32.mrf.mxu0
        %v685 = vadd.f32 %v352, %v684
        %686 = vmatmul.f32.gmra.mxu0 %v479
        %v687 = vpop.f32.mrf.mxu0
        %v688 = vadd.f32 %v352, %v687
        %689 = vmatmul.f32.gmra.mxu0 %v482
        %v690 = vpop.f32.mrf.mxu0
        %v691 = vadd.f32 %v352, %v690
        %692 = vmatmul.f32.gmra.mxu0 %v485
        %v693 = vpop.f32.mrf.mxu0
        %v694 = vadd.f32 %v352, %v693
        %695 = vmatmul.f32.gmra.mxu0 %v488
        %v696 = vpop.f32.mrf.mxu0
        %v697 = vadd.f32 %v352, %v696
        %698 = vmatmul.f32.gmra.mxu0 %v491
        %v699 = vpop.f32.mrf.mxu0
        %v700 = vadd.f32 %v352, %v699
        %701 = vmatmul.f32.gmra.mxu0 %v494
        %v702 = vpop.f32.mrf.mxu0
        %v703 = vadd.f32 %v352, %v702
        %704 = vmatmul.f32.gmra.mxu0 %v497
        %v705 = vpop.f32.mrf.mxu0
        %v706 = vadd.f32 %v352, %v705
        %707 = vmatmul.f32.gmra.mxu0 %v500
        %v708 = vpop.f32.mrf.mxu0
        %v709 = vadd.f32 %v352, %v708
        %710 = vmatmul.f32.gmra.mxu0 %v503
        %v711 = vpop.f32.mrf.mxu0
        %v712 = vadd.f32 %v352, %v711
        %713 = vmatmul.f32.gmra.mxu0 %v506
        %v714 = vpop.f32.mrf.mxu0
        %v715 = vadd.f32 %v352, %v714
        %716 = vmatmul.f32.gmra.mxu0 %v509
        %v717 = vpop.f32.mrf.mxu0
        %v718 = vadd.f32 %v352, %v717
        %719 = vmatmul.f32.gmra.mxu0 %v512
        %v720 = vpop.f32.mrf.mxu0
        %v721 = vadd.f32 %v352, %v720
        %722 = vmatmul.f32.gmra.mxu0 %v515
        %v723 = vpop.f32.mrf.mxu0
        %v724 = vadd.f32 %v352, %v723
        %725 = vmatmul.f32.gmra.mxu0 %v518
        %v726 = vpop.f32.mrf.mxu0
        %v727 = vadd.f32 %v352, %v726
        %728 = vmatmul.f32.gmra.mxu0 %v521
        %v729 = vpop.f32.mrf.mxu0
        %v730 = vadd.f32 %v352, %v729
        %731 = vmatmul.f32.gmra.mxu0 %v524
        %v732 = vpop.f32.mrf.mxu0
        %v733 = vadd.f32 %v352, %v732
        %734 = vmatmul.f32.gmra.mxu0 %v527
        %v735 = vpop.f32.mrf.mxu0
        %v736 = vadd.f32 %v352, %v735
        %737 = vmatmul.f32.gmra.mxu0 %v530
        %v738 = vpop.f32.mrf.mxu0
        %v739 = vadd.f32 %v352, %v738
        %740 = vmatmul.f32.gmra.mxu0 %v533
        %v741 = vpop.f32.mrf.mxu0
        %v742 = vadd.f32 %v352, %v741
        %743 = vmatmul.f32.gmra.mxu0 %v536
        %v744 = vpop.f32.mrf.mxu0
        %v745 = vadd.f32 %v352, %v744
        %746 = vmatmul.f32.gmra.mxu0 %v539
        %v747 = vpop.f32.mrf.mxu0
        %v748 = vadd.f32 %v352, %v747
        %749 = vmatmul.f32.gmra.mxu0 %v542
        %v750 = vpop.f32.mrf.mxu0
        %v751 = vadd.f32 %v352, %v750
        %752 = vmatmul.f32.gmra.mxu0 %v545
        %v753 = vpop.f32.mrf.mxu0
        %v754 = vadd.f32 %v352, %v753
        %755 = vdwg.mxu0
        %v756 = vmax.f32 %v565, 0.0
        %v757 = vmax.f32 %v568, 0.0
        %v758 = vmax.f32 %v571, 0.0
        %v759 = vmax.f32 %v574, 0.0
        %v760 = vmax.f32 %v577, 0.0
        %v761 = vmax.f32 %v580, 0.0
        %v762 = vmax.f32 %v583, 0.0
        %v763 = vmax.f32 %v586, 0.0
        %v764 = vmax.f32 %v589, 0.0
        %v765 = vmax.f32 %v592, 0.0
        %v766 = vmax.f32 %v595, 0.0
        %v767 = vmax.f32 %v598, 0.0
        %v768 = vmax.f32 %v601, 0.0
        %v769 = vmax.f32 %v604, 0.0
        %v770 = vmax.f32 %v607, 0.0
        %v771 = vmax.f32 %v610, 0.0
        %v772 = vmax.f32 %v613, 0.0
        %v773 = vmax.f32 %v616, 0.0
        %v774 = vmax.f32 %v619, 0.0
        %v775 = vmax.f32 %v622, 0.0
        %v776 = vmax.f32 %v625, 0.0
        %v777 = vmax.f32 %v628, 0.0
        %v778 = vmax.f32 %v631, 0.0
        %v779 = vmax.f32 %v634, 0.0
        %v780 = vmax.f32 %v637, 0.0
        %v781 = vmax.f32 %v640, 0.0
        %v782 = vmax.f32 %v643, 0.0
        %v783 = vmax.f32 %v646, 0.0
        %v784 = vmax.f32 %v649, 0.0
        %v785 = vmax.f32 %v652, 0.0
        %v786 = vmax.f32 %v655, 0.0
        %v787 = vmax.f32 %v658, 0.0
        %v788 = vmax.f32 %v661, 0.0
        %v789 = vmax.f32 %v664, 0.0
        %v790 = vmax.f32 %v667, 0.0
        %v791 = vmax.f32 %v670, 0.0
        %v792 = vmax.f32 %v673, 0.0
        %v793 = vmax.f32 %v676, 0.0
        %v794 = vmax.f32 %v679, 0.0
        %v795 = vmax.f32 %v682, 0.0
        %v796 = vmax.f32 %v685, 0.0
        %v797 = vmax.f32 %v688, 0.0
        %v798 = vmax.f32 %v691, 0.0
        %v799 = vmax.f32 %v694, 0.0
        %v800 = vmax.f32 %v697, 0.0
        %v801 = vmax.f32 %v700, 0.0
        %v802 = vmax.f32 %v703, 0.0
        %v803 = vmax.f32 %v706, 0.0
        %v804 = vmax.f32 %v709, 0.0
        %v805 = vmax.f32 %v712, 0.0
        %v806 = vmax.f32 %v715, 0.0
        %v807 = vmax.f32 %v718, 0.0
        %v808 = vmax.f32 %v721, 0.0
        %v809 = vmax.f32 %v724, 0.0
        %v810 = vmax.f32 %v727, 0.0
        %v811 = vmax.f32 %v730, 0.0
        %v812 = vmax.f32 %v733, 0.0
        %v813 = vmax.f32 %v736, 0.0
        %v814 = vmax.f32 %v739, 0.0
        %v815 = vmax.f32 %v742, 0.0
        %v816 = vmax.f32 %v745, 0.0
        %v817 = vmax.f32 %v748, 0.0
        %v818 = vmax.f32 %v751, 0.0
        %v819 = vmax.f32 %v754, 0.0
        %v820 = vld [vmem:[%s3] sm:$0xff]
        %v821 = vld [vmem:[%s3 + $0x8] sm:$0xff]
        %v822 = vld [vmem:[%s3 + $0x10] sm:$0xff]
        %v823 = vld [vmem:[%s3 + $0x18] sm:$0xff]
        %v824 = vld [vmem:[%s3 + $0x20] sm:$0xff]
        %v825 = vld [vmem:[%s3 + $0x28] sm:$0xff]
        %v826 = vld [vmem:[%s3 + $0x30] sm:$0xff]
        %v827 = vld [vmem:[%s3 + $0x38] sm:$0xff]
        %v828 = vld [vmem:[%s3 + $0x40] sm:$0xff]
        %v829 = vld [vmem:[%s3 + $0x48] sm:$0xff]
        %v830 = vld [vmem:[%s3 + $0x50] sm:$0xff]
        %v831 = vld [vmem:[%s3 + $0x58] sm:$0xff]
        %v832 = vld [vmem:[%s3 + $0x60] sm:$0xff]
        %v833 = vld [vmem:[%s3 + $0x68] sm:$0xff]
        %v834 = vld [vmem:[%s3 + $0x70] sm:$0xff]
        %v835 = vld [vmem:[%s3 + $0x78] sm:$0xff]
        %v836 = vld [vmem:[%s4] sm:$0x1]
        %v838 = vperm.slane %v836, 0
        %840 = vmatpush.msra.mxu0 %v835
        %841 = vmatpush.msra.mxu0 %v834
        %842 = vmatpush.msra.mxu0 %v833
        %843 = vmatpush.msra.mxu0 %v832
        %844 = vmatpush.msra.mxu0 %v831
        %845 = vmatpush.msra.mxu0 %v830
        %846 = vmatpush.msra.mxu0 %v829
        %847 = vmatpush.msra.mxu0 %v828
        %848 = vmatpush.msra.mxu0 %v827
        %849 = vmatpush.msra.mxu0 %v826
        %850 = vmatpush.msra.mxu0 %v825
        %851 = vmatpush.msra.mxu0 %v824
        %852 = vmatpush.msra.mxu0 %v823
        %853 = vmatpush.msra.mxu0 %v822
        %854 = vmatpush.msra.mxu0 %v821
        %855 = vmatpush.msra.mxu0 %v820
        %856 = vmatmul.f32.gmra.mxu0 %v756
        %v857 = vpop.f32.mrf.mxu0
        %v858 = vadd.f32 %v838, %v857
        %859 = vmatmul.f32.gmra.mxu0 %v757
        %v860 = vpop.f32.mrf.mxu0
        %v861 = vadd.f32 %v838, %v860
        %862 = vmatmul.f32.gmra.mxu0 %v758
        %v863 = vpop.f32.mrf.mxu0
        %v864 = vadd.f32 %v838, %v863
        %865 = vmatmul.f32.gmra.mxu0 %v759
        %v866 = vpop.f32.mrf.mxu0
        %v867 = vadd.f32 %v838, %v866
        %868 = vmatmul.f32.gmra.mxu0 %v760
        %v869 = vpop.f32.mrf.mxu0
        %v870 = vadd.f32 %v838, %v869
        %871 = vmatmul.f32.gmra.mxu0 %v761
        %v872 = vpop.f32.mrf.mxu0
        %v873 = vadd.f32 %v838, %v872
        %874 = vmatmul.f32.gmra.mxu0 %v762
        %v875 = vpop.f32.mrf.mxu0
        %v876 = vadd.f32 %v838, %v875
        %877 = vmatmul.f32.gmra.mxu0 %v763
        %v878 = vpop.f32.mrf.mxu0
        %v879 = vadd.f32 %v838, %v878
        %880 = vmatmul.f32.gmra.mxu0 %v764
        %v881 = vpop.f32.mrf.mxu0
        %v882 = vadd.f32 %v838, %v881
        %883 = vmatmul.f32.gmra.mxu0 %v765
        %v884 = vpop.f32.mrf.mxu0
        %v885 = vadd.f32 %v838, %v884
        %886 = vmatmul.f32.gmra.mxu0 %v766
        %v887 = vpop.f32.mrf.mxu0
        %v888 = vadd.f32 %v838, %v887
        %889 = vmatmul.f32.gmra.mxu0 %v767
        %v890 = vpop.f32.mrf.mxu0
        %v891 = vadd.f32 %v838, %v890
        %892 = vmatmul.f32.gmra.mxu0 %v768
        %v893 = vpop.f32.mrf.mxu0
        %v894 = vadd.f32 %v838, %v893
        %895 = vmatmul.f32.gmra.mxu0 %v769
        %v896 = vpop.f32.mrf.mxu0
        %v897 = vadd.f32 %v838, %v896
        %898 = vmatmul.f32.gmra.mxu0 %v770
        %v899 = vpop.f32.mrf.mxu0
        %v900 = vadd.f32 %v838, %v899
        %901 = vmatmul.f32.gmra.mxu0 %v771
        %v902 = vpop.f32.mrf.mxu0
        %v903 = vadd.f32 %v838, %v902
        %904 = vmatmul.f32.gmra.mxu0 %v772
        %v905 = vpop.f32.mrf.mxu0
        %v906 = vadd.f32 %v838, %v905
        %907 = vmatmul.f32.gmra.mxu0 %v773
        %v908 = vpop.f32.mrf.mxu0
        %v909 = vadd.f32 %v838, %v908
        %910 = vmatmul.f32.gmra.mxu0 %v774
        %v911 = vpop.f32.mrf.mxu0
        %v912 = vadd.f32 %v838, %v911
        %913 = vmatmul.f32.gmra.mxu0 %v775
        %v914 = vpop.f32.mrf.mxu0
        %v915 = vadd.f32 %v838, %v914
        %916 = vmatmul.f32.gmra.mxu0 %v776
        %v917 = vpop.f32.mrf.mxu0
        %v918 = vadd.f32 %v838, %v917
        %919 = vmatmul.f32.gmra.mxu0 %v777
        %v920 = vpop.f32.mrf.mxu0
        %v921 = vadd.f32 %v838, %v920
        %922 = vmatmul.f32.gmra.mxu0 %v778
        %v923 = vpop.f32.mrf.mxu0
        %v924 = vadd.f32 %v838, %v923
        %925 = vmatmul.f32.gmra.mxu0 %v779
        %v926 = vpop.f32.mrf.mxu0
        %v927 = vadd.f32 %v838, %v926
        %928 = vmatmul.f32.gmra.mxu0 %v780
        %v929 = vpop.f32.mrf.mxu0
        %v930 = vadd.f32 %v838, %v929
        %931 = vmatmul.f32.gmra.mxu0 %v781
        %v932 = vpop.f32.mrf.mxu0
        %v933 = vadd.f32 %v838, %v932
        %934 = vmatmul.f32.gmra.mxu0 %v782
        %v935 = vpop.f32.mrf.mxu0
        %v936 = vadd.f32 %v838, %v935
        %937 = vmatmul.f32.gmra.mxu0 %v783
        %v938 = vpop.f32.mrf.mxu0
        %v939 = vadd.f32 %v838, %v938
        %940 = vmatmul.f32.gmra.mxu0 %v784
        %v941 = vpop.f32.mrf.mxu0
        %v942 = vadd.f32 %v838, %v941
        %943 = vmatmul.f32.gmra.mxu0 %v785
        %v944 = vpop.f32.mrf.mxu0
        %v945 = vadd.f32 %v838, %v944
        %946 = vmatmul.f32.gmra.mxu0 %v786
        %v947 = vpop.f32.mrf.mxu0
        %v948 = vadd.f32 %v838, %v947
        %949 = vmatmul.f32.gmra.mxu0 %v787
        %v950 = vpop.f32.mrf.mxu0
        %v951 = vadd.f32 %v838, %v950
        %952 = vmatmul.f32.gmra.mxu0 %v788
        %v953 = vpop.f32.mrf.mxu0
        %v954 = vadd.f32 %v838, %v953
        %955 = vmatmul.f32.gmra.mxu0 %v789
        %v956 = vpop.f32.mrf.mxu0
        %v957 = vadd.f32 %v838, %v956
        %958 = vmatmul.f32.gmra.mxu0 %v790
        %v959 = vpop.f32.mrf.mxu0
        %v960 = vadd.f32 %v838, %v959
        %961 = vmatmul.f32.gmra.mxu0 %v791
        %v962 = vpop.f32.mrf.mxu0
        %v963 = vadd.f32 %v838, %v962
        %964 = vmatmul.f32.gmra.mxu0 %v792
        %v965 = vpop.f32.mrf.mxu0
        %v966 = vadd.f32 %v838, %v965
        %967 = vmatmul.f32.gmra.mxu0 %v793
        %v968 = vpop.f32.mrf.mxu0
        %v969 = vadd.f32 %v838, %v968
        %970 = vmatmul.f32.gmra.mxu0 %v794
        %v971 = vpop.f32.mrf.mxu0
        %v972 = vadd.f32 %v838, %v971
        %973 = vmatmul.f32.gmra.mxu0 %v795
        %v974 = vpop.f32.mrf.mxu0
        %v975 = vadd.f32 %v838, %v974
        %976 = vmatmul.f32.gmra.mxu0 %v796
        %v977 = vpop.f32.mrf.mxu0
        %v978 = vadd.f32 %v838, %v977
        %979 = vmatmul.f32.gmra.mxu0 %v797
        %v980 = vpop.f32.mrf.mxu0
        %v981 = vadd.f32 %v838, %v980
        %982 = vmatmul.f32.gmra.mxu0 %v798
        %v983 = vpop.f32.mrf.mxu0
        %v984 = vadd.f32 %v838, %v983
        %985 = vmatmul.f32.gmra.mxu0 %v799
        %v986 = vpop.f32.mrf.mxu0
        %v987 = vadd.f32 %v838, %v986
        %988 = vmatmul.f32.gmra.mxu0 %v800
        %v989 = vpop.f32.mrf.mxu0
        %v990 = vadd.f32 %v838, %v989
        %991 = vmatmul.f32.gmra.mxu0 %v801
        %v992 = vpop.f32.mrf.mxu0
        %v993 = vadd.f32 %v838, %v992
        %994 = vmatmul.f32.gmra.mxu0 %v802
        %v995 = vpop.f32.mrf.mxu0
        %v996 = vadd.f32 %v838, %v995
        %997 = vmatmul.f32.gmra.mxu0 %v803
        %v998 = vpop.f32.mrf.mxu0
        %v999 = vadd.f32 %v838, %v998
        %1000 = vmatmul.f32.gmra.mxu0 %v804
        %v1001 = vpop.f32.mrf.mxu0
        %v1002 = vadd.f32 %v838, %v1001
        %1003 = vmatmul.f32.gmra.mxu0 %v805
        %v1004 = vpop.f32.mrf.mxu0
        %v1005 = vadd.f32 %v838, %v1004
        %1006 = vmatmul.f32.gmra.mxu0 %v806
        %v1007 = vpop.f32.mrf.mxu0
        %v1008 = vadd.f32 %v838, %v1007
        %1009 = vmatmul.f32.gmra.mxu0 %v807
        %v1010 = vpop.f32.mrf.mxu0
        %v1011 = vadd.f32 %v838, %v1010
        %1012 = vmatmul.f32.gmra.mxu0 %v808
        %v1013 = vpop.f32.mrf.mxu0
        %v1014 = vadd.f32 %v838, %v1013
        %1015 = vmatmul.f32.gmra.mxu0 %v809
        %v1016 = vpop.f32.mrf.mxu0
        %v1017 = vadd.f32 %v838, %v1016
        %1018 = vmatmul.f32.gmra.mxu0 %v810
        %v1019 = vpop.f32.mrf.mxu0
        %v1020 = vadd.f32 %v838, %v1019
        %1021 = vmatmul.f32.gmra.mxu0 %v811
        %v1022 = vpop.f32.mrf.mxu0
        %v1023 = vadd.f32 %v838, %v1022
        %1024 = vmatmul.f32.gmra.mxu0 %v812
        %v1025 = vpop.f32.mrf.mxu0
        %v1026 = vadd.f32 %v838, %v1025
        %1027 = vmatmul.f32.gmra.mxu0 %v813
        %v1028 = vpop.f32.mrf.mxu0
        %v1029 = vadd.f32 %v838, %v1028
        %1030 = vmatmul.f32.gmra.mxu0 %v814
        %v1031 = vpop.f32.mrf.mxu0
        %v1032 = vadd.f32 %v838, %v1031
        %1033 = vmatmul.f32.gmra.mxu0 %v815
        %v1034 = vpop.f32.mrf.mxu0
        %v1035 = vadd.f32 %v838, %v1034
        %1036 = vmatmul.f32.gmra.mxu0 %v816
        %v1037 = vpop.f32.mrf.mxu0
        %v1038 = vadd.f32 %v838, %v1037
        %1039 = vmatmul.f32.gmra.mxu0 %v817
        %v1040 = vpop.f32.mrf.mxu0
        %v1041 = vadd.f32 %v838, %v1040
        %1042 = vmatmul.f32.gmra.mxu0 %v818
        %v1043 = vpop.f32.mrf.mxu0
        %v1044 = vadd.f32 %v838, %v1043
        %1045 = vmatmul.f32.gmra.mxu0 %v819
        %v1046 = vpop.f32.mrf.mxu0
        %v1047 = vadd.f32 %v838, %v1046
        %1048 = vdwg.mxu0
        %v1049 = vmax.f32 %v858, 0.0
        %v1050 = vmax.f32 %v861, 0.0
        %v1051 = vmax.f32 %v864, 0.0
        %v1052 = vmax.f32 %v867, 0.0
        %v1053 = vmax.f32 %v870, 0.0
        %v1054 = vmax.f32 %v873, 0.0
        %v1055 = vmax.f32 %v876, 0.0
        %v1056 = vmax.f32 %v879, 0.0
        %v1057 = vmax.f32 %v882, 0.0
        %v1058 = vmax.f32 %v885, 0.0
        %v1059 = vmax.f32 %v888, 0.0
        %v1060 = vmax.f32 %v891, 0.0
        %v1061 = vmax.f32 %v894, 0.0
        %v1062 = vmax.f32 %v897, 0.0
        %v1063 = vmax.f32 %v900, 0.0
        %v1064 = vmax.f32 %v903, 0.0
        %v1065 = vmax.f32 %v906, 0.0
        %v1066 = vmax.f32 %v909, 0.0
        %v1067 = vmax.f32 %v912, 0.0
        %v1068 = vmax.f32 %v915, 0.0
        %v1069 = vmax.f32 %v918, 0.0
        %v1070 = vmax.f32 %v921, 0.0
        %v1071 = vmax.f32 %v924, 0.0
        %v1072 = vmax.f32 %v927, 0.0
        %v1073 = vmax.f32 %v930, 0.0
        %v1074 = vmax.f32 %v933, 0.0
        %v1075 = vmax.f32 %v936, 0.0
        %v1076 = vmax.f32 %v939, 0.0
        %v1077 = vmax.f32 %v942, 0.0
        %v1078 = vmax.f32 %v945, 0.0
        %v1079 = vmax.f32 %v948, 0.0
        %v1080 = vmax.f32 %v951, 0.0
        %v1081 = vmax.f32 %v954, 0.0
        %v1082 = vmax.f32 %v957, 0.0
        %v1083 = vmax.f32 %v960, 0.0
        %v1084 = vmax.f32 %v963, 0.0
        %v1085 = vmax.f32 %v966, 0.0
        %v1086 = vmax.f32 %v969, 0.0
        %v1087 = vmax.f32 %v972, 0.0
        %v1088 = vmax.f32 %v975, 0.0
        %v1089 = vmax.f32 %v978, 0.0
        %v1090 = vmax.f32 %v981, 0.0
        %v1091 = vmax.f32 %v984, 0.0
        %v1092 = vmax.f32 %v987, 0.0
        %v1093 = vmax.f32 %v990, 0.0
        %v1094 = vmax.f32 %v993, 0.0
        %v1095 = vmax.f32 %v996, 0.0
        %v1096 = vmax.f32 %v999, 0.0
        %v1097 = vmax.f32 %v1002, 0.0
        %v1098 = vmax.f32 %v1005, 0.0
        %v1099 = vmax.f32 %v1008, 0.0
        %v1100 = vmax.f32 %v1011, 0.0
        %v1101 = vmax.f32 %v1014, 0.0
        %v1102 = vmax.f32 %v1017, 0.0
        %v1103 = vmax.f32 %v1020, 0.0
        %v1104 = vmax.f32 %v1023, 0.0
        %v1105 = vmax.f32 %v1026, 0.0
        %v1106 = vmax.f32 %v1029, 0.0
        %v1107 = vmax.f32 %v1032, 0.0
        %v1108 = vmax.f32 %v1035, 0.0
        %v1109 = vmax.f32 %v1038, 0.0
        %v1110 = vmax.f32 %v1041, 0.0
        %v1111 = vmax.f32 %v1044, 0.0
        %v1112 = vmax.f32 %v1047, 0.0
        %v1113 = vld [vmem:[%s5] sm:$0x1]
        %v1115 = vperm.slane %v1113, 0
        %v1117 = vmul.f32 %v1049, %v1115
        %v1118 = vmul.f32 %v1050, %v1115
        %v1119 = vmul.f32 %v1051, %v1115
        %v1120 = vmul.f32 %v1052, %v1115
        %v1121 = vmul.f32 %v1053, %v1115
        %v1122 = vmul.f32 %v1054, %v1115
        %v1123 = vmul.f32 %v1055, %v1115
        %v1124 = vmul.f32 %v1056, %v1115
        %v1125 = vmul.f32 %v1057, %v1115
        %v1126 = vmul.f32 %v1058, %v1115
        %v1127 = vmul.f32 %v1059, %v1115
        %v1128 = vmul.f32 %v1060, %v1115
        %v1129 = vmul.f32 %v1061, %v1115
        %v1130 = vmul.f32 %v1062, %v1115
        %v1131 = vmul.f32 %v1063, %v1115
        %v1132 = vmul.f32 %v1064, %v1115
        %v1133 = vmul.f32 %v1065, %v1115
        %v1134 = vmul.f32 %v1066, %v1115
        %v1135 = vmul.f32 %v1067, %v1115
        %v1136 = vmul.f32 %v1068, %v1115
        %v1137 = vmul.f32 %v1069, %v1115
        %v1138 = vmul.f32 %v1070, %v1115
        %v1139 = vmul.f32 %v1071, %v1115
        %v1140 = vmul.f32 %v1072, %v1115
        %v1141 = vmul.f32 %v1073, %v1115
        %v1142 = vmul.f32 %v1074, %v1115
        %v1143 = vmul.f32 %v1075, %v1115
        %v1144 = vmul.f32 %v1076, %v1115
        %v1145 = vmul.f32 %v1077, %v1115
        %v1146 = vmul.f32 %v1078, %v1115
        %v1147 = vmul.f32 %v1079, %v1115
        %v1148 = vmul.f32 %v1080, %v1115
        %v1149 = vmul.f32 %v1081, %v1115
        %v1150 = vmul.f32 %v1082, %v1115
        %v1151 = vmul.f32 %v1083, %v1115
        %v1152 = vmul.f32 %v1084, %v1115
        %v1153 = vmul.f32 %v1085, %v1115
        %v1154 = vmul.f32 %v1086, %v1115
        %v1155 = vmul.f32 %v1087, %v1115
        %v1156 = vmul.f32 %v1088, %v1115
        %v1157 = vmul.f32 %v1089, %v1115
        %v1158 = vmul.f32 %v1090, %v1115
        %v1159 = vmul.f32 %v1091, %v1115
        %v1160 = vmul.f32 %v1092, %v1115
        %v1161 = vmul.f32 %v1093, %v1115
        %v1162 = vmul.f32 %v1094, %v1115
        %v1163 = vmul.f32 %v1095, %v1115
        %v1164 = vmul.f32 %v1096, %v1115
        %v1165 = vmul.f32 %v1097, %v1115
        %v1166 = vmul.f32 %v1098, %v1115
        %v1167 = vmul.f32 %v1099, %v1115
        %v1168 = vmul.f32 %v1100, %v1115
        %v1169 = vmul.f32 %v1101, %v1115
        %v1170 = vmul.f32 %v1102, %v1115
        %v1171 = vmul.f32 %v1103, %v1115
        %v1172 = vmul.f32 %v1104, %v1115
        %v1173 = vmul.f32 %v1105, %v1115
        %v1174 = vmul.f32 %v1106, %v1115
        %v1175 = vmul.f32 %v1107, %v1115
        %v1176 = vmul.f32 %v1108, %v1115
        %v1177 = vmul.f32 %v1109, %v1115
        %v1178 = vmul.f32 %v1110, %v1115
        %v1179 = vmul.f32 %v1111, %v1115
        %v1180 = vmul.f32 %v1112, %v1115
        %1181 = vadd.xlane.f32.xlu0 %v1117
        %v1182 = vpop.xlane.xlu0 %1181
        %1183 = vadd.xlane.f32.xlu0 %v1118
        %v1184 = vpop.xlane.xlu0 %1183
        %1185 = vadd.xlane.f32.xlu0 %v1119
        %v1186 = vpop.xlane.xlu0 %1185
        %1187 = vadd.xlane.f32.xlu0 %v1120
        %v1188 = vpop.xlane.xlu0 %1187
        %1189 = vadd.xlane.f32.xlu0 %v1121
        %v1190 = vpop.xlane.xlu0 %1189
        %1191 = vadd.xlane.f32.xlu0 %v1122
        %v1192 = vpop.xlane.xlu0 %1191
        %1193 = vadd.xlane.f32.xlu0 %v1123
        %v1194 = vpop.xlane.xlu0 %1193
        %1195 = vadd.xlane.f32.xlu0 %v1124
        %v1196 = vpop.xlane.xlu0 %1195
        %1197 = vadd.xlane.f32.xlu0 %v1125
        %v1198 = vpop.xlane.xlu0 %1197
        %1199 = vadd.xlane.f32.xlu0 %v1126
        %v1200 = vpop.xlane.xlu0 %1199
        %1201 = vadd.xlane.f32.xlu0 %v1127
        %v1202 = vpop.xlane.xlu0 %1201
        %1203 = vadd.xlane.f32.xlu0 %v1128
        %v1204 = vpop.xlane.xlu0 %1203
        %1205 = vadd.xlane.f32.xlu0 %v1129
        %v1206 = vpop.xlane.xlu0 %1205
        %1207 = vadd.xlane.f32.xlu0 %v1130
        %v1208 = vpop.xlane.xlu0 %1207
        %1209 = vadd.xlane.f32.xlu0 %v1131
        %v1210 = vpop.xlane.xlu0 %1209
        %1211 = vadd.xlane.f32.xlu0 %v1132
        %v1212 = vpop.xlane.xlu0 %1211
        %1213 = vadd.xlane.f32.xlu0 %v1133
        %v1214 = vpop.xlane.xlu0 %1213
        %1215 = vadd.xlane.f32.xlu0 %v1134
        %v1216 = vpop.xlane.xlu0 %1215
        %1217 = vadd.xlane.f32.xlu0 %v1135
        %v1218 = vpop.xlane.xlu0 %1217
        %1219 = vadd.xlane.f32.xlu0 %v1136
        %v1220 = vpop.xlane.xlu0 %1219
        %1221 = vadd.xlane.f32.xlu0 %v1137
        %v1222 = vpop.xlane.xlu0 %1221
        %1223 = vadd.xlane.f32.xlu0 %v1138
        %v1224 = vpop.xlane.xlu0 %1223
        %1225 = vadd.xlane.f32.xlu0 %v1139
        %v1226 = vpop.xlane.xlu0 %1225
        %1227 = vadd.xlane.f32.xlu0 %v1140
        %v1228 = vpop.xlane.xlu0 %1227
        %1229 = vadd.xlane.f32.xlu0 %v1141
        %v1230 = vpop.xlane.xlu0 %1229
        %1231 = vadd.xlane.f32.xlu0 %v1142
        %v1232 = vpop.xlane.xlu0 %1231
        %1233 = vadd.xlane.f32.xlu0 %v1143
        %v1234 = vpop.xlane.xlu0 %1233
        %1235 = vadd.xlane.f32.xlu0 %v1144
        %v1236 = vpop.xlane.xlu0 %1235
        %1237 = vadd.xlane.f32.xlu0 %v1145
        %v1238 = vpop.xlane.xlu0 %1237
        %1239 = vadd.xlane.f32.xlu0 %v1146
        %v1240 = vpop.xlane.xlu0 %1239
        %1241 = vadd.xlane.f32.xlu0 %v1147
        %v1242 = vpop.xlane.xlu0 %1241
        %1243 = vadd.xlane.f32.xlu0 %v1148
        %v1244 = vpop.xlane.xlu0 %1243
        %1245 = vadd.xlane.f32.xlu0 %v1149
        %v1246 = vpop.xlane.xlu0 %1245
        %1247 = vadd.xlane.f32.xlu0 %v1150
        %v1248 = vpop.xlane.xlu0 %1247
        %1249 = vadd.xlane.f32.xlu0 %v1151
        %v1250 = vpop.xlane.xlu0 %1249
        %1251 = vadd.xlane.f32.xlu0 %v1152
        %v1252 = vpop.xlane.xlu0 %1251
        %1253 = vadd.xlane.f32.xlu0 %v1153
        %v1254 = vpop.xlane.xlu0 %1253
        %1255 = vadd.xlane.f32.xlu0 %v1154
        %v1256 = vpop.xlane.xlu0 %1255
        %1257 = vadd.xlane.f32.xlu0 %v1155
        %v1258 = vpop.xlane.xlu0 %1257
        %1259 = vadd.xlane.f32.xlu0 %v1156
        %v1260 = vpop.xlane.xlu0 %1259
        %1261 = vadd.xlane.f32.xlu0 %v1157
        %v1262 = vpop.xlane.xlu0 %1261
        %1263 = vadd.xlane.f32.xlu0 %v1158
        %v1264 = vpop.xlane.xlu0 %1263
        %1265 = vadd.xlane.f32.xlu0 %v1159
        %v1266 = vpop.xlane.xlu0 %1265
        %1267 = vadd.xlane.f32.xlu0 %v1160
        %v1268 = vpop.xlane.xlu0 %1267
        %1269 = vadd.xlane.f32.xlu0 %v1161
        %v1270 = vpop.xlane.xlu0 %1269
        %1271 = vadd.xlane.f32.xlu0 %v1162
        %v1272 = vpop.xlane.xlu0 %1271
        %1273 = vadd.xlane.f32.xlu0 %v1163
        %v1274 = vpop.xlane.xlu0 %1273
        %1275 = vadd.xlane.f32.xlu0 %v1164
        %v1276 = vpop.xlane.xlu0 %1275
        %1277 = vadd.xlane.f32.xlu0 %v1165
        %v1278 = vpop.xlane.xlu0 %1277
        %1279 = vadd.xlane.f32.xlu0 %v1166
        %v1280 = vpop.xlane.xlu0 %1279
        %1281 = vadd.xlane.f32.xlu0 %v1167
        %v1282 = vpop.xlane.xlu0 %1281
        %1283 = vadd.xlane.f32.xlu0 %v1168
        %v1284 = vpop.xlane.xlu0 %1283
        %1285 = vadd.xlane.f32.xlu0 %v1169
        %v1286 = vpop.xlane.xlu0 %1285
        %1287 = vadd.xlane.f32.xlu0 %v1170
        %v1288 = vpop.xlane.xlu0 %1287
        %1289 = vadd.xlane.f32.xlu0 %v1171
        %v1290 = vpop.xlane.xlu0 %1289
        %1291 = vadd.xlane.f32.xlu0 %v1172
        %v1292 = vpop.xlane.xlu0 %1291
        %1293 = vadd.xlane.f32.xlu0 %v1173
        %v1294 = vpop.xlane.xlu0 %1293
        %1295 = vadd.xlane.f32.xlu0 %v1174
        %v1296 = vpop.xlane.xlu0 %1295
        %1297 = vadd.xlane.f32.xlu0 %v1175
        %v1298 = vpop.xlane.xlu0 %1297
        %1299 = vadd.xlane.f32.xlu0 %v1176
        %v1300 = vpop.xlane.xlu0 %1299
        %1301 = vadd.xlane.f32.xlu0 %v1177
        %v1302 = vpop.xlane.xlu0 %1301
        %1303 = vadd.xlane.f32.xlu0 %v1178
        %v1304 = vpop.xlane.xlu0 %1303
        %1305 = vadd.xlane.f32.xlu0 %v1179
        %v1306 = vpop.xlane.xlu0 %1305
        %1307 = vadd.xlane.f32.xlu0 %v1180
        %v1308 = vpop.xlane.xlu0 %1307
        %v1309 = vld [vmem:[#allocation2] sm:$0x1]
        %1311 = vset.pattern.permute.xlu0 0
        %1312 = vperm.xlu0 %1311, %v1309
        %v1313 = vpop.permute.xlu0 %1312
        %v1315 = vperm.slane %v1313, 0
        %v1316 = vadd.f32 %v1182, %v1315
        %v1317 = vadd.f32 %v1184, %v1315
        %v1318 = vadd.f32 %v1186, %v1315
        %v1319 = vadd.f32 %v1188, %v1315
        %v1320 = vadd.f32 %v1190, %v1315
        %v1321 = vadd.f32 %v1192, %v1315
        %v1322 = vadd.f32 %v1194, %v1315
        %v1323 = vadd.f32 %v1196, %v1315
        %v1324 = vadd.f32 %v1198, %v1315
        %v1325 = vadd.f32 %v1200, %v1315
        %v1326 = vadd.f32 %v1202, %v1315
        %v1327 = vadd.f32 %v1204, %v1315
        %v1328 = vadd.f32 %v1206, %v1315
        %v1329 = vadd.f32 %v1208, %v1315
        %v1330 = vadd.f32 %v1210, %v1315
        %v1331 = vadd.f32 %v1212, %v1315
        %v1332 = vadd.f32 %v1214, %v1315
        %v1333 = vadd.f32 %v1216, %v1315
        %v1334 = vadd.f32 %v1218, %v1315
        %v1335 = vadd.f32 %v1220, %v1315
        %v1336 = vadd.f32 %v1222, %v1315
        %v1337 = vadd.f32 %v1224, %v1315
        %v1338 = vadd.f32 %v1226, %v1315
        %v1339 = vadd.f32 %v1228, %v1315
        %v1340 = vadd.f32 %v1230, %v1315
        %v1341 = vadd.f32 %v1232, %v1315
        %v1342 = vadd.f32 %v1234, %v1315
        %v1343 = vadd.f32 %v1236, %v1315
        %v1344 = vadd.f32 %v1238, %v1315
        %v1345 = vadd.f32 %v1240, %v1315
        %v1346 = vadd.f32 %v1242, %v1315
        %v1347 = vadd.f32 %v1244, %v1315
        %v1348 = vadd.f32 %v1246, %v1315
        %v1349 = vadd.f32 %v1248, %v1315
        %v1350 = vadd.f32 %v1250, %v1315
        %v1351 = vadd.f32 %v1252, %v1315
        %v1352 = vadd.f32 %v1254, %v1315
        %v1353 = vadd.f32 %v1256, %v1315
        %v1354 = vadd.f32 %v1258, %v1315
        %v1355 = vadd.f32 %v1260, %v1315
        %v1356 = vadd.f32 %v1262, %v1315
        %v1357 = vadd.f32 %v1264, %v1315
        %v1358 = vadd.f32 %v1266, %v1315
        %v1359 = vadd.f32 %v1268, %v1315
        %v1360 = vadd.f32 %v1270, %v1315
        %v1361 = vadd.f32 %v1272, %v1315
        %v1362 = vadd.f32 %v1274, %v1315
        %v1363 = vadd.f32 %v1276, %v1315
        %v1364 = vadd.f32 %v1278, %v1315
        %v1365 = vadd.f32 %v1280, %v1315
        %v1366 = vadd.f32 %v1282, %v1315
        %v1367 = vadd.f32 %v1284, %v1315
        %v1368 = vadd.f32 %v1286, %v1315
        %v1369 = vadd.f32 %v1288, %v1315
        %v1370 = vadd.f32 %v1290, %v1315
        %v1371 = vadd.f32 %v1292, %v1315
        %v1372 = vadd.f32 %v1294, %v1315
        %v1373 = vadd.f32 %v1296, %v1315
        %v1374 = vadd.f32 %v1298, %v1315
        %v1375 = vadd.f32 %v1300, %v1315
        %v1376 = vadd.f32 %v1302, %v1315
        %v1377 = vadd.f32 %v1304, %v1315
        %v1378 = vadd.f32 %v1306, %v1315
        %v1379 = vadd.f32 %v1308, %v1315
        %v1444 = vperm.slane %v1316, 0
        %v1445 = vperm.slane %v1316, 1
        %v1446 = vperm.slane %v1316, 2
        %v1447 = vperm.slane %v1316, 3
        %v1448 = vperm.slane %v1316, 4
        %v1449 = vperm.slane %v1316, 5
        %v1450 = vperm.slane %v1316, 6
        %v1451 = vperm.slane %v1316, 7
        %v1452 = vperm.slane %v1317, 0
        %v1453 = vperm.slane %v1317, 1
        %v1454 = vperm.slane %v1317, 2
        %v1455 = vperm.slane %v1317, 3
        %v1456 = vperm.slane %v1317, 4
        %v1457 = vperm.slane %v1317, 5
        %v1458 = vperm.slane %v1317, 6
        %v1459 = vperm.slane %v1317, 7
        %v1460 = vperm.slane %v1318, 0
        %v1461 = vperm.slane %v1318, 1
        %v1462 = vperm.slane %v1318, 2
        %v1463 = vperm.slane %v1318, 3
        %v1464 = vperm.slane %v1318, 4
        %v1465 = vperm.slane %v1318, 5
        %v1466 = vperm.slane %v1318, 6
        %v1467 = vperm.slane %v1318, 7
        %v1468 = vperm.slane %v1319, 0
        %v1469 = vperm.slane %v1319, 1
        %v1470 = vperm.slane %v1319, 2
        %v1471 = vperm.slane %v1319, 3
        %v1472 = vperm.slane %v1319, 4
        %v1473 = vperm.slane %v1319, 5
        %v1474 = vperm.slane %v1319, 6
        %v1475 = vperm.slane %v1319, 7
        %v1476 = vperm.slane %v1320, 0
        %v1477 = vperm.slane %v1320, 1
        %v1478 = vperm.slane %v1320, 2
        %v1479 = vperm.slane %v1320, 3
        %v1480 = vperm.slane %v1320, 4
        %v1481 = vperm.slane %v1320, 5
        %v1482 = vperm.slane %v1320, 6
        %v1483 = vperm.slane %v1320, 7
        %v1484 = vperm.slane %v1321, 0
        %v1485 = vperm.slane %v1321, 1
        %v1486 = vperm.slane %v1321, 2
        %v1487 = vperm.slane %v1321, 3
        %v1488 = vperm.slane %v1321, 4
        %v1489 = vperm.slane %v1321, 5
        %v1490 = vperm.slane %v1321, 6
        %v1491 = vperm.slane %v1321, 7
        %v1492 = vperm.slane %v1322, 0
        %v1493 = vperm.slane %v1322, 1
        %v1494 = vperm.slane %v1322, 2
        %v1495 = vperm.slane %v1322, 3
        %v1496 = vperm.slane %v1322, 4
        %v1497 = vperm.slane %v1322, 5
        %v1498 = vperm.slane %v1322, 6
        %v1499 = vperm.slane %v1322, 7
        %v1500 = vperm.slane %v1323, 0
        %v1501 = vperm.slane %v1323, 1
        %v1502 = vperm.slane %v1323, 2
        %v1503 = vperm.slane %v1323, 3
        %v1504 = vperm.slane %v1323, 4
        %v1505 = vperm.slane %v1323, 5
        %v1506 = vperm.slane %v1323, 6
        %v1507 = vperm.slane %v1323, 7
        %v1508 = vperm.slane %v1324, 0
        %v1509 = vperm.slane %v1324, 1
        %v1510 = vperm.slane %v1324, 2
        %v1511 = vperm.slane %v1324, 3
        %v1512 = vperm.slane %v1324, 4
        %v1513 = vperm.slane %v1324, 5
        %v1514 = vperm.slane %v1324, 6
        %v1515 = vperm.slane %v1324, 7
        %v1516 = vperm.slane %v1325, 0
        %v1517 = vperm.slane %v1325, 1
        %v1518 = vperm.slane %v1325, 2
        %v1519 = vperm.slane %v1325, 3
        %v1520 = vperm.slane %v1325, 4
        %v1521 = vperm.slane %v1325, 5
        %v1522 = vperm.slane %v1325, 6
        %v1523 = vperm.slane %v1325, 7
        %v1524 = vperm.slane %v1326, 0
        %v1525 = vperm.slane %v1326, 1
        %v1526 = vperm.slane %v1326, 2
        %v1527 = vperm.slane %v1326, 3
        %v1528 = vperm.slane %v1326, 4
        %v1529 = vperm.slane %v1326, 5
        %v1530 = vperm.slane %v1326, 6
        %v1531 = vperm.slane %v1326, 7
        %v1532 = vperm.slane %v1327, 0
        %v1533 = vperm.slane %v1327, 1
        %v1534 = vperm.slane %v1327, 2
        %v1535 = vperm.slane %v1327, 3
        %v1536 = vperm.slane %v1327, 4
        %v1537 = vperm.slane %v1327, 5
        %v1538 = vperm.slane %v1327, 6
        %v1539 = vperm.slane %v1327, 7
        %v1540 = vperm.slane %v1328, 0
        %v1541 = vperm.slane %v1328, 1
        %v1542 = vperm.slane %v1328, 2
        %v1543 = vperm.slane %v1328, 3
        %v1544 = vperm.slane %v1328, 4
        %v1545 = vperm.slane %v1328, 5
        %v1546 = vperm.slane %v1328, 6
        %v1547 = vperm.slane %v1328, 7
        %v1548 = vperm.slane %v1329, 0
        %v1549 = vperm.slane %v1329, 1
        %v1550 = vperm.slane %v1329, 2
        %v1551 = vperm.slane %v1329, 3
        %v1552 = vperm.slane %v1329, 4
        %v1553 = vperm.slane %v1329, 5
        %v1554 = vperm.slane %v1329, 6
        %v1555 = vperm.slane %v1329, 7
        %v1556 = vperm.slane %v1330, 0
        %v1557 = vperm.slane %v1330, 1
        %v1558 = vperm.slane %v1330, 2
        %v1559 = vperm.slane %v1330, 3
        %v1560 = vperm.slane %v1330, 4
        %v1561 = vperm.slane %v1330, 5
        %v1562 = vperm.slane %v1330, 6
        %v1563 = vperm.slane %v1330, 7
        %v1564 = vperm.slane %v1331, 0
        %v1565 = vperm.slane %v1331, 1
        %v1566 = vperm.slane %v1331, 2
        %v1567 = vperm.slane %v1331, 3
        %v1568 = vperm.slane %v1331, 4
        %v1569 = vperm.slane %v1331, 5
        %v1570 = vperm.slane %v1331, 6
        %v1571 = vperm.slane %v1331, 7
        %v1572 = vperm.slane %v1332, 0
        %v1573 = vperm.slane %v1332, 1
        %v1574 = vperm.slane %v1332, 2
        %v1575 = vperm.slane %v1332, 3
        %v1576 = vperm.slane %v1332, 4
        %v1577 = vperm.slane %v1332, 5
        %v1578 = vperm.slane %v1332, 6
        %v1579 = vperm.slane %v1332, 7
        %v1580 = vperm.slane %v1333, 0
        %v1581 = vperm.slane %v1333, 1
        %v1582 = vperm.slane %v1333, 2
        %v1583 = vperm.slane %v1333, 3
        %v1584 = vperm.slane %v1333, 4
        %v1585 = vperm.slane %v1333, 5
        %v1586 = vperm.slane %v1333, 6
        %v1587 = vperm.slane %v1333, 7
        %v1588 = vperm.slane %v1334, 0
        %v1589 = vperm.slane %v1334, 1
        %v1590 = vperm.slane %v1334, 2
        %v1591 = vperm.slane %v1334, 3
        %v1592 = vperm.slane %v1334, 4
        %v1593 = vperm.slane %v1334, 5
        %v1594 = vperm.slane %v1334, 6
        %v1595 = vperm.slane %v1334, 7
        %v1596 = vperm.slane %v1335, 0
        %v1597 = vperm.slane %v1335, 1
        %v1598 = vperm.slane %v1335, 2
        %v1599 = vperm.slane %v1335, 3
        %v1600 = vperm.slane %v1335, 4
        %v1601 = vperm.slane %v1335, 5
        %v1602 = vperm.slane %v1335, 6
        %v1603 = vperm.slane %v1335, 7
        %v1604 = vperm.slane %v1336, 0
        %v1605 = vperm.slane %v1336, 1
        %v1606 = vperm.slane %v1336, 2
        %v1607 = vperm.slane %v1336, 3
        %v1608 = vperm.slane %v1336, 4
        %v1609 = vperm.slane %v1336, 5
        %v1610 = vperm.slane %v1336, 6
        %v1611 = vperm.slane %v1336, 7
        %v1612 = vperm.slane %v1337, 0
        %v1613 = vperm.slane %v1337, 1
        %v1614 = vperm.slane %v1337, 2
        %v1615 = vperm.slane %v1337, 3
        %v1616 = vperm.slane %v1337, 4
        %v1617 = vperm.slane %v1337, 5
        %v1618 = vperm.slane %v1337, 6
        %v1619 = vperm.slane %v1337, 7
        %v1620 = vperm.slane %v1338, 0
        %v1621 = vperm.slane %v1338, 1
        %v1622 = vperm.slane %v1338, 2
        %v1623 = vperm.slane %v1338, 3
        %v1624 = vperm.slane %v1338, 4
        %v1625 = vperm.slane %v1338, 5
        %v1626 = vperm.slane %v1338, 6
        %v1627 = vperm.slane %v1338, 7
        %v1628 = vperm.slane %v1339, 0
        %v1629 = vperm.slane %v1339, 1
        %v1630 = vperm.slane %v1339, 2
        %v1631 = vperm.slane %v1339, 3
        %v1632 = vperm.slane %v1339, 4
        %v1633 = vperm.slane %v1339, 5
        %v1634 = vperm.slane %v1339, 6
        %v1635 = vperm.slane %v1339, 7
        %v1636 = vperm.slane %v1340, 0
        %v1637 = vperm.slane %v1340, 1
        %v1638 = vperm.slane %v1340, 2
        %v1639 = vperm.slane %v1340, 3
        %v1640 = vperm.slane %v1340, 4
        %v1641 = vperm.slane %v1340, 5
        %v1642 = vperm.slane %v1340, 6
        %v1643 = vperm.slane %v1340, 7
        %v1644 = vperm.slane %v1341, 0
        %v1645 = vperm.slane %v1341, 1
        %v1646 = vperm.slane %v1341, 2
        %v1647 = vperm.slane %v1341, 3
        %v1648 = vperm.slane %v1341, 4
        %v1649 = vperm.slane %v1341, 5
        %v1650 = vperm.slane %v1341, 6
        %v1651 = vperm.slane %v1341, 7
        %v1652 = vperm.slane %v1342, 0
        %v1653 = vperm.slane %v1342, 1
        %v1654 = vperm.slane %v1342, 2
        %v1655 = vperm.slane %v1342, 3
        %v1656 = vperm.slane %v1342, 4
        %v1657 = vperm.slane %v1342, 5
        %v1658 = vperm.slane %v1342, 6
        %v1659 = vperm.slane %v1342, 7
        %v1660 = vperm.slane %v1343, 0
        %v1661 = vperm.slane %v1343, 1
        %v1662 = vperm.slane %v1343, 2
        %v1663 = vperm.slane %v1343, 3
        %v1664 = vperm.slane %v1343, 4
        %v1665 = vperm.slane %v1343, 5
        %v1666 = vperm.slane %v1343, 6
        %v1667 = vperm.slane %v1343, 7
        %v1668 = vperm.slane %v1344, 0
        %v1669 = vperm.slane %v1344, 1
        %v1670 = vperm.slane %v1344, 2
        %v1671 = vperm.slane %v1344, 3
        %v1672 = vperm.slane %v1344, 4
        %v1673 = vperm.slane %v1344, 5
        %v1674 = vperm.slane %v1344, 6
        %v1675 = vperm.slane %v1344, 7
        %v1676 = vperm.slane %v1345, 0
        %v1677 = vperm.slane %v1345, 1
        %v1678 = vperm.slane %v1345, 2
        %v1679 = vperm.slane %v1345, 3
        %v1680 = vperm.slane %v1345, 4
        %v1681 = vperm.slane %v1345, 5
        %v1682 = vperm.slane %v1345, 6
        %v1683 = vperm.slane %v1345, 7
        %v1684 = vperm.slane %v1346, 0
        %v1685 = vperm.slane %v1346, 1
        %v1686 = vperm.slane %v1346, 2
        %v1687 = vperm.slane %v1346, 3
        %v1688 = vperm.slane %v1346, 4
        %v1689 = vperm.slane %v1346, 5
        %v1690 = vperm.slane %v1346, 6
        %v1691 = vperm.slane %v1346, 7
        %v1692 = vperm.slane %v1347, 0
        %v1693 = vperm.slane %v1347, 1
        %v1694 = vperm.slane %v1347, 2
        %v1695 = vperm.slane %v1347, 3
        %v1696 = vperm.slane %v1347, 4
        %v1697 = vperm.slane %v1347, 5
        %v1698 = vperm.slane %v1347, 6
        %v1699 = vperm.slane %v1347, 7
        %v1700 = vperm.slane %v1348, 0
        %v1701 = vperm.slane %v1348, 1
        %v1702 = vperm.slane %v1348, 2
        %v1703 = vperm.slane %v1348, 3
        %v1704 = vperm.slane %v1348, 4
        %v1705 = vperm.slane %v1348, 5
        %v1706 = vperm.slane %v1348, 6
        %v1707 = vperm.slane %v1348, 7
        %v1708 = vperm.slane %v1349, 0
        %v1709 = vperm.slane %v1349, 1
        %v1710 = vperm.slane %v1349, 2
        %v1711 = vperm.slane %v1349, 3
        %v1712 = vperm.slane %v1349, 4
        %v1713 = vperm.slane %v1349, 5
        %v1714 = vperm.slane %v1349, 6
        %v1715 = vperm.slane %v1349, 7
        %v1716 = vperm.slane %v1350, 0
        %v1717 = vperm.slane %v1350, 1
        %v1718 = vperm.slane %v1350, 2
        %v1719 = vperm.slane %v1350, 3
        %v1720 = vperm.slane %v1350, 4
        %v1721 = vperm.slane %v1350, 5
        %v1722 = vperm.slane %v1350, 6
        %v1723 = vperm.slane %v1350, 7
        %v1724 = vperm.slane %v1351, 0
        %v1725 = vperm.slane %v1351, 1
        %v1726 = vperm.slane %v1351, 2
        %v1727 = vperm.slane %v1351, 3
        %v1728 = vperm.slane %v1351, 4
        %v1729 = vperm.slane %v1351, 5
        %v1730 = vperm.slane %v1351, 6
        %v1731 = vperm.slane %v1351, 7
        %v1732 = vperm.slane %v1352, 0
        %v1733 = vperm.slane %v1352, 1
        %v1734 = vperm.slane %v1352, 2
        %v1735 = vperm.slane %v1352, 3
        %v1736 = vperm.slane %v1352, 4
        %v1737 = vperm.slane %v1352, 5
        %v1738 = vperm.slane %v1352, 6
        %v1739 = vperm.slane %v1352, 7
        %v1740 = vperm.slane %v1353, 0
        %v1741 = vperm.slane %v1353, 1
        %v1742 = vperm.slane %v1353, 2
        %v1743 = vperm.slane %v1353, 3
        %v1744 = vperm.slane %v1353, 4
        %v1745 = vperm.slane %v1353, 5
        %v1746 = vperm.slane %v1353, 6
        %v1747 = vperm.slane %v1353, 7
        %v1748 = vperm.slane %v1354, 0
        %v1749 = vperm.slane %v1354, 1
        %v1750 = vperm.slane %v1354, 2
        %v1751 = vperm.slane %v1354, 3
        %v1752 = vperm.slane %v1354, 4
        %v1753 = vperm.slane %v1354, 5
        %v1754 = vperm.slane %v1354, 6
        %v1755 = vperm.slane %v1354, 7
        %v1756 = vperm.slane %v1355, 0
        %v1757 = vperm.slane %v1355, 1
        %v1758 = vperm.slane %v1355, 2
        %v1759 = vperm.slane %v1355, 3
        %v1760 = vperm.slane %v1355, 4
        %v1761 = vperm.slane %v1355, 5
        %v1762 = vperm.slane %v1355, 6
        %v1763 = vperm.slane %v1355, 7
        %v1764 = vperm.slane %v1356, 0
        %v1765 = vperm.slane %v1356, 1
        %v1766 = vperm.slane %v1356, 2
        %v1767 = vperm.slane %v1356, 3
        %v1768 = vperm.slane %v1356, 4
        %v1769 = vperm.slane %v1356, 5
        %v1770 = vperm.slane %v1356, 6
        %v1771 = vperm.slane %v1356, 7
        %v1772 = vperm.slane %v1357, 0
        %v1773 = vperm.slane %v1357, 1
        %v1774 = vperm.slane %v1357, 2
        %v1775 = vperm.slane %v1357, 3
        %v1776 = vperm.slane %v1357, 4
        %v1777 = vperm.slane %v1357, 5
        %v1778 = vperm.slane %v1357, 6
        %v1779 = vperm.slane %v1357, 7
        %v1780 = vperm.slane %v1358, 0
        %v1781 = vperm.slane %v1358, 1
        %v1782 = vperm.slane %v1358, 2
        %v1783 = vperm.slane %v1358, 3
        %v1784 = vperm.slane %v1358, 4
        %v1785 = vperm.slane %v1358, 5
        %v1786 = vperm.slane %v1358, 6
        %v1787 = vperm.slane %v1358, 7
        %v1788 = vperm.slane %v1359, 0
        %v1789 = vperm.slane %v1359, 1
        %v1790 = vperm.slane %v1359, 2
        %v1791 = vperm.slane %v1359, 3
        %v1792 = vperm.slane %v1359, 4
        %v1793 = vperm.slane %v1359, 5
        %v1794 = vperm.slane %v1359, 6
        %v1795 = vperm.slane %v1359, 7
        %v1796 = vperm.slane %v1360, 0
        %v1797 = vperm.slane %v1360, 1
        %v1798 = vperm.slane %v1360, 2
        %v1799 = vperm.slane %v1360, 3
        %v1800 = vperm.slane %v1360, 4
        %v1801 = vperm.slane %v1360, 5
        %v1802 = vperm.slane %v1360, 6
        %v1803 = vperm.slane %v1360, 7
        %v1804 = vperm.slane %v1361, 0
        %v1805 = vperm.slane %v1361, 1
        %v1806 = vperm.slane %v1361, 2
        %v1807 = vperm.slane %v1361, 3
        %v1808 = vperm.slane %v1361, 4
        %v1809 = vperm.slane %v1361, 5
        %v1810 = vperm.slane %v1361, 6
        %v1811 = vperm.slane %v1361, 7
        %v1812 = vperm.slane %v1362, 0
        %v1813 = vperm.slane %v1362, 1
        %v1814 = vperm.slane %v1362, 2
        %v1815 = vperm.slane %v1362, 3
        %v1816 = vperm.slane %v1362, 4
        %v1817 = vperm.slane %v1362, 5
        %v1818 = vperm.slane %v1362, 6
        %v1819 = vperm.slane %v1362, 7
        %v1820 = vperm.slane %v1363, 0
        %v1821 = vperm.slane %v1363, 1
        %v1822 = vperm.slane %v1363, 2
        %v1823 = vperm.slane %v1363, 3
        %v1824 = vperm.slane %v1363, 4
        %v1825 = vperm.slane %v1363, 5
        %v1826 = vperm.slane %v1363, 6
        %v1827 = vperm.slane %v1363, 7
        %v1828 = vperm.slane %v1364, 0
        %v1829 = vperm.slane %v1364, 1
        %v1830 = vperm.slane %v1364, 2
        %v1831 = vperm.slane %v1364, 3
        %v1832 = vperm.slane %v1364, 4
        %v1833 = vperm.slane %v1364, 5
        %v1834 = vperm.slane %v1364, 6
        %v1835 = vperm.slane %v1364, 7
        %v1836 = vperm.slane %v1365, 0
        %v1837 = vperm.slane %v1365, 1
        %v1838 = vperm.slane %v1365, 2
        %v1839 = vperm.slane %v1365, 3
        %v1840 = vperm.slane %v1365, 4
        %v1841 = vperm.slane %v1365, 5
        %v1842 = vperm.slane %v1365, 6
        %v1843 = vperm.slane %v1365, 7
        %v1844 = vperm.slane %v1366, 0
        %v1845 = vperm.slane %v1366, 1
        %v1846 = vperm.slane %v1366, 2
        %v1847 = vperm.slane %v1366, 3
        %v1848 = vperm.slane %v1366, 4
        %v1849 = vperm.slane %v1366, 5
        %v1850 = vperm.slane %v1366, 6
        %v1851 = vperm.slane %v1366, 7
        %v1852 = vperm.slane %v1367, 0
        %v1853 = vperm.slane %v1367, 1
        %v1854 = vperm.slane %v1367, 2
        %v1855 = vperm.slane %v1367, 3
        %v1856 = vperm.slane %v1367, 4
        %v1857 = vperm.slane %v1367, 5
        %v1858 = vperm.slane %v1367, 6
        %v1859 = vperm.slane %v1367, 7
        %v1860 = vperm.slane %v1368, 0
        %v1861 = vperm.slane %v1368, 1
        %v1862 = vperm.slane %v1368, 2
        %v1863 = vperm.slane %v1368, 3
        %v1864 = vperm.slane %v1368, 4
        %v1865 = vperm.slane %v1368, 5
        %v1866 = vperm.slane %v1368, 6
        %v1867 = vperm.slane %v1368, 7
        %v1868 = vperm.slane %v1369, 0
        %v1869 = vperm.slane %v1369, 1
        %v1870 = vperm.slane %v1369, 2
        %v1871 = vperm.slane %v1369, 3
        %v1872 = vperm.slane %v1369, 4
        %v1873 = vperm.slane %v1369, 5
        %v1874 = vperm.slane %v1369, 6
        %v1875 = vperm.slane %v1369, 7
        %v1876 = vperm.slane %v1370, 0
        %v1877 = vperm.slane %v1370, 1
        %v1878 = vperm.slane %v1370, 2
        %v1879 = vperm.slane %v1370, 3
        %v1880 = vperm.slane %v1370, 4
        %v1881 = vperm.slane %v1370, 5
        %v1882 = vperm.slane %v1370, 6
        %v1883 = vperm.slane %v1370, 7
        %v1884 = vperm.slane %v1371, 0
        %v1885 = vperm.slane %v1371, 1
        %v1886 = vperm.slane %v1371, 2
        %v1887 = vperm.slane %v1371, 3
        %v1888 = vperm.slane %v1371, 4
        %v1889 = vperm.slane %v1371, 5
        %v1890 = vperm.slane %v1371, 6
        %v1891 = vperm.slane %v1371, 7
        %v1892 = vperm.slane %v1372, 0
        %v1893 = vperm.slane %v1372, 1
        %v1894 = vperm.slane %v1372, 2
        %v1895 = vperm.slane %v1372, 3
        %v1896 = vperm.slane %v1372, 4
        %v1897 = vperm.slane %v1372, 5
        %v1898 = vperm.slane %v1372, 6
        %v1899 = vperm.slane %v1372, 7
        %v1900 = vperm.slane %v1373, 0
        %v1901 = vperm.slane %v1373, 1
        %v1902 = vperm.slane %v1373, 2
        %v1903 = vperm.slane %v1373, 3
        %v1904 = vperm.slane %v1373, 4
        %v1905 = vperm.slane %v1373, 5
        %v1906 = vperm.slane %v1373, 6
        %v1907 = vperm.slane %v1373, 7
        %v1908 = vperm.slane %v1374, 0
        %v1909 = vperm.slane %v1374, 1
        %v1910 = vperm.slane %v1374, 2
        %v1911 = vperm.slane %v1374, 3
        %v1912 = vperm.slane %v1374, 4
        %v1913 = vperm.slane %v1374, 5
        %v1914 = vperm.slane %v1374, 6
        %v1915 = vperm.slane %v1374, 7
        %v1916 = vperm.slane %v1375, 0
        %v1917 = vperm.slane %v1375, 1
        %v1918 = vperm.slane %v1375, 2
        %v1919 = vperm.slane %v1375, 3
        %v1920 = vperm.slane %v1375, 4
        %v1921 = vperm.slane %v1375, 5
        %v1922 = vperm.slane %v1375, 6
        %v1923 = vperm.slane %v1375, 7
        %v1924 = vperm.slane %v1376, 0
        %v1925 = vperm.slane %v1376, 1
        %v1926 = vperm.slane %v1376, 2
        %v1927 = vperm.slane %v1376, 3
        %v1928 = vperm.slane %v1376, 4
        %v1929 = vperm.slane %v1376, 5
        %v1930 = vperm.slane %v1376, 6
        %v1931 = vperm.slane %v1376, 7
        %v1932 = vperm.slane %v1377, 0
        %v1933 = vperm.slane %v1377, 1
        %v1934 = vperm.slane %v1377, 2
        %v1935 = vperm.slane %v1377, 3
        %v1936 = vperm.slane %v1377, 4
        %v1937 = vperm.slane %v1377, 5
        %v1938 = vperm.slane %v1377, 6
        %v1939 = vperm.slane %v1377, 7
        %v1940 = vperm.slane %v1378, 0
        %v1941 = vperm.slane %v1378, 1
        %v1942 = vperm.slane %v1378, 2
        %v1943 = vperm.slane %v1378, 3
        %v1944 = vperm.slane %v1378, 4
        %v1945 = vperm.slane %v1378, 5
        %v1946 = vperm.slane %v1378, 6
        %v1947 = vperm.slane %v1378, 7
        %v1948 = vperm.slane %v1379, 0
        %v1949 = vperm.slane %v1379, 1
        %v1950 = vperm.slane %v1379, 2
        %v1951 = vperm.slane %v1379, 3
        %v1952 = vperm.slane %v1379, 4
        %v1953 = vperm.slane %v1379, 5
        %v1954 = vperm.slane %v1379, 6
        %v1955 = vperm.slane %v1379, 7
        %1956 = vst [vmem:[#allocation1] ss:$9 sm:$0xff] %v1444
        %s1957 = scalar_lea.vmem [#allocation1], 1
        %1958 = vst [vmem:[%s1957] ss:$9 sm:$0xff] %v1445
        %s1959 = scalar_lea.vmem [#allocation1], 2
        %1960 = vst [vmem:[%s1959] ss:$9 sm:$0xff] %v1446
        %s1961 = scalar_lea.vmem [#allocation1], 3
        %1962 = vst [vmem:[%s1961] ss:$9 sm:$0xff] %v1447
        %s1963 = scalar_lea.vmem [#allocation1], 4
        %1964 = vst [vmem:[%s1963] ss:$9 sm:$0xff] %v1448
        %s1965 = scalar_lea.vmem [#allocation1], 5
        %1966 = vst [vmem:[%s1965] ss:$9 sm:$0xff] %v1449
        %s1967 = scalar_lea.vmem [#allocation1], 6
        %1968 = vst [vmem:[%s1967] ss:$9 sm:$0xff] %v1450
        %s1969 = scalar_lea.vmem [#allocation1], 7
        %1970 = vst [vmem:[%s1969] ss:$9 sm:$0xff] %v1451
        %v1971 = vld [vmem:[#allocation1] sm:$0xff]
        %1972 = vst [vmem:[#allocation1] ss:$9 sm:$0xff] %v1452
        %1973 = vst [vmem:[%s1957] ss:$9 sm:$0xff] %v1453
        %1974 = vst [vmem:[%s1959] ss:$9 sm:$0xff] %v1454
        %1975 = vst [vmem:[%s1961] ss:$9 sm:$0xff] %v1455
        %1976 = vst [vmem:[%s1963] ss:$9 sm:$0xff] %v1456
        %1977 = vst [vmem:[%s1965] ss:$9 sm:$0xff] %v1457
        %1978 = vst [vmem:[%s1967] ss:$9 sm:$0xff] %v1458
        %1979 = vst [vmem:[%s1969] ss:$9 sm:$0xff] %v1459
        %v1980 = vld [vmem:[#allocation1] sm:$0xff]
        %1981 = vst [vmem:[#allocation1] ss:$9 sm:$0xff] %v1460
        %1982 = vst [vmem:[%s1957] ss:$9 sm:$0xff] %v1461
        %1983 = vst [vmem:[%s1959] ss:$9 sm:$0xff] %v1462
        %1984 = vst [vmem:[%s1961] ss:$9 sm:$0xff] %v1463
        %1985 = vst [vmem:[%s1963] ss:$9 sm:$0xff] %v1464
        %1986 = vst [vmem:[%s1965] ss:$9 sm:$0xff] %v1465
        %1987 = vst [vmem:[%s1967] ss:$9 sm:$0xff] %v1466
        %1988 = vst [vmem:[%s1969] ss:$9 sm:$0xff] %v1467
        %v1989 = vld [vmem:[#allocation1] sm:$0xff]
        %1990 = vst [vmem:[#allocation1] ss:$9 sm:$0xff] %v1468
        %1991 = vst [vmem:[%s1957] ss:$9 sm:$0xff] %v1469
        %1992 = vst [vmem:[%s1959] ss:$9 sm:$0xff] %v1470
        %1993 = vst [vmem:[%s1961] ss:$9 sm:$0xff] %v1471
        %1994 = vst [vmem:[%s1963] ss:$9 sm:$0xff] %v1472
        %1995 = vst [vmem:[%s1965] ss:$9 sm:$0xff] %v1473
        %1996 = vst [vmem:[%s1967] ss:$9 sm:$0xff] %v1474
        %1997 = vst [vmem:[%s1969] ss:$9 sm:$0xff] %v1475
        %v1998 = vld [vmem:[#allocation1] sm:$0xff]
        %1999 = vst [vmem:[#allocation1] ss:$9 sm:$0xff] %v1476
        %2000 = vst [vmem:[%s1957] ss:$9 sm:$0xff] %v1477
        %2001 = vst [vmem:[%s1959] ss:$9 sm:$0xff] %v1478
        %2002 = vst [vmem:[%s1961] ss:$9 sm:$0xff] %v1479
        %2003 = vst [vmem:[%s1963] ss:$9 sm:$0xff] %v1480
        %2004 = vst [vmem:[%s1965] ss:$9 sm:$0xff] %v1481
        %2005 = vst [vmem:[%s1967] ss:$9 sm:$0xff] %v1482
        %2006 = vst [vmem:[%s1969] ss:$9 sm:$0xff] %v1483
        %v2007 = vld [vmem:[#allocation1] sm:$0xff]
        %2008 = vst [vmem:[#allocation1] ss:$9 sm:$0xff] %v1484
        %2009 = vst [vmem:[%s1957] ss:$9 sm:$0xff] %v1485
        %2010 = vst [vmem:[%s1959] ss:$9 sm:$0xff] %v1486
        %2011 = vst [vmem:[%s1961] ss:$9 sm:$0xff] %v1487
        %2012 = vst [vmem:[%s1963] ss:$9 sm:$0xff] %v1488
        %2013 = vst [vmem:[%s1965] ss:$9 sm:$0xff] %v1489
        %2014 = vst [vmem:[%s1967] ss:$9 sm:$0xff] %v1490
        %2015 = vst [vmem:[%s1969] ss:$9 sm:$0xff] %v1491
        %v2016 = vld [vmem:[#allocation1] sm:$0xff]
        %2017 = vst [vmem:[#allocation1] ss:$9 sm:$0xff] %v1492
        %2018 = vst [vmem:[%s1957] ss:$9 sm:$0xff] %v1493
        %2019 = vst [vmem:[%s1959] ss:$9 sm:$0xff] %v1494
        %2020 = vst [vmem:[%s1961] ss:$9 sm:$0xff] %v1495
        %2021 = vst [vmem:[%s1963] ss:$9 sm:$0xff] %v1496
        %2022 = vst [vmem:[%s1965] ss:$9 sm:$0xff] %v1497
        %2023 = vst [vmem:[%s1967] ss:$9 sm:$0xff] %v1498
        %2024 = vst [vmem:[%s1969] ss:$9 sm:$0xff] %v1499
        %v2025 = vld [vmem:[#allocation1] sm:$0xff]
        %2026 = vst [vmem:[#allocation1] ss:$9 sm:$0xff] %v1500
        %2027 = vst [vmem:[%s1957] ss:$9 sm:$0xff] %v1501
        %2028 = vst [vmem:[%s1959] ss:$9 sm:$0xff] %v1502
        %2029 = vst [vmem:[%s1961] ss:$9 sm:$0xff] %v1503
        %2030 = vst [vmem:[%s1963] ss:$9 sm:$0xff] %v1504
        %2031 = vst [vmem:[%s1965] ss:$9 sm:$0xff] %v1505
        %2032 = vst [vmem:[%s1967] ss:$9 sm:$0xff] %v1506
        %2033 = vst [vmem:[%s1969] ss:$9 sm:$0xff] %v1507
        %v2034 = vld [vmem:[#allocation1] sm:$0xff]
        %2035 = vst [vmem:[#allocation1] ss:$9 sm:$0xff] %v1508
        %2036 = vst [vmem:[%s1957] ss:$9 sm:$0xff] %v1509
        %2037 = vst [vmem:[%s1959] ss:$9 sm:$0xff] %v1510
        %2038 = vst [vmem:[%s1961] ss:$9 sm:$0xff] %v1511
        %2039 = vst [vmem:[%s1963] ss:$9 sm:$0xff] %v1512
        %2040 = vst [vmem:[%s1965] ss:$9 sm:$0xff] %v1513
        %2041 = vst [vmem:[%s1967] ss:$9 sm:$0xff] %v1514
        %2042 = vst [vmem:[%s1969] ss:$9 sm:$0xff] %v1515
        %v2043 = vld [vmem:[#allocation1] sm:$0xff]
        %2044 = vst [vmem:[#allocation1] ss:$9 sm:$0xff] %v1516
        %2045 = vst [vmem:[%s1957] ss:$9 sm:$0xff] %v1517
        %2046 = vst [vmem:[%s1959] ss:$9 sm:$0xff] %v1518
        %2047 = vst [vmem:[%s1961] ss:$9 sm:$0xff] %v1519
        %2048 = vst [vmem:[%s1963] ss:$9 sm:$0xff] %v1520
        %2049 = vst [vmem:[%s1965] ss:$9 sm:$0xff] %v1521
        %2050 = vst [vmem:[%s1967] ss:$9 sm:$0xff] %v1522
        %2051 = vst [vmem:[%s1969] ss:$9 sm:$0xff] %v1523
        %v2052 = vld [vmem:[#allocation1] sm:$0xff]
        %2053 = vst [vmem:[#allocation1] ss:$9 sm:$0xff] %v1524
        %2054 = vst [vmem:[%s1957] ss:$9 sm:$0xff] %v1525
        %2055 = vst [vmem:[%s1959] ss:$9 sm:$0xff] %v1526
        %2056 = vst [vmem:[%s1961] ss:$9 sm:$0xff] %v1527
        %2057 = vst [vmem:[%s1963] ss:$9 sm:$0xff] %v1528
        %2058 = vst [vmem:[%s1965] ss:$9 sm:$0xff] %v1529
        %2059 = vst [vmem:[%s1967] ss:$9 sm:$0xff] %v1530
        %2060 = vst [vmem:[%s1969] ss:$9 sm:$0xff] %v1531
        %v2061 = vld [vmem:[#allocation1] sm:$0xff]
        %2062 = vst [vmem:[#allocation1] ss:$9 sm:$0xff] %v1532
        %2063 = vst [vmem:[%s1957] ss:$9 sm:$0xff] %v1533
        %2064 = vst [vmem:[%s1959] ss:$9 sm:$0xff] %v1534
        %2065 = vst [vmem:[%s1961] ss:$9 sm:$0xff] %v1535
        %2066 = vst [vmem:[%s1963] ss:$9 sm:$0xff] %v1536
        %2067 = vst [vmem:[%s1965] ss:$9 sm:$0xff] %v1537
        %2068 = vst [vmem:[%s1967] ss:$9 sm:$0xff] %v1538
        %2069 = vst [vmem:[%s1969] ss:$9 sm:$0xff] %v1539
        %v2070 = vld [vmem:[#allocation1] sm:$0xff]
        %2071 = vst [vmem:[#allocation1] ss:$9 sm:$0xff] %v1540
        %2072 = vst [vmem:[%s1957] ss:$9 sm:$0xff] %v1541
        %2073 = vst [vmem:[%s1959] ss:$9 sm:$0xff] %v1542
        %2074 = vst [vmem:[%s1961] ss:$9 sm:$0xff] %v1543
        %2075 = vst [vmem:[%s1963] ss:$9 sm:$0xff] %v1544
        %2076 = vst [vmem:[%s1965] ss:$9 sm:$0xff] %v1545
        %2077 = vst [vmem:[%s1967] ss:$9 sm:$0xff] %v1546
        %2078 = vst [vmem:[%s1969] ss:$9 sm:$0xff] %v1547
        %v2079 = vld [vmem:[#allocation1] sm:$0xff]
        %2080 = vst [vmem:[#allocation1] ss:$9 sm:$0xff] %v1548
        %2081 = vst [vmem:[%s1957] ss:$9 sm:$0xff] %v1549
        %2082 = vst [vmem:[%s1959] ss:$9 sm:$0xff] %v1550
        %2083 = vst [vmem:[%s1961] ss:$9 sm:$0xff] %v1551
        %2084 = vst [vmem:[%s1963] ss:$9 sm:$0xff] %v1552
        %2085 = vst [vmem:[%s1965] ss:$9 sm:$0xff] %v1553
        %2086 = vst [vmem:[%s1967] ss:$9 sm:$0xff] %v1554
        %2087 = vst [vmem:[%s1969] ss:$9 sm:$0xff] %v1555
        %v2088 = vld [vmem:[#allocation1] sm:$0xff]
        %2089 = vst [vmem:[#allocation1] ss:$9 sm:$0xff] %v1556
        %2090 = vst [vmem:[%s1957] ss:$9 sm:$0xff] %v1557
        %2091 = vst [vmem:[%s1959] ss:$9 sm:$0xff] %v1558
        %2092 = vst [vmem:[%s1961] ss:$9 sm:$0xff] %v1559
        %2093 = vst [vmem:[%s1963] ss:$9 sm:$0xff] %v1560
        %2094 = vst [vmem:[%s1965] ss:$9 sm:$0xff] %v1561
        %2095 = vst [vmem:[%s1967] ss:$9 sm:$0xff] %v1562
        %2096 = vst [vmem:[%s1969] ss:$9 sm:$0xff] %v1563
        %v2097 = vld [vmem:[#allocation1] sm:$0xff]
        %2098 = vst [vmem:[#allocation1] ss:$9 sm:$0xff] %v1564
        %2099 = vst [vmem:[%s1957] ss:$9 sm:$0xff] %v1565
        %2100 = vst [vmem:[%s1959] ss:$9 sm:$0xff] %v1566
        %2101 = vst [vmem:[%s1961] ss:$9 sm:$0xff] %v1567
        %2102 = vst [vmem:[%s1963] ss:$9 sm:$0xff] %v1568
        %2103 = vst [vmem:[%s1965] ss:$9 sm:$0xff] %v1569
        %2104 = vst [vmem:[%s1967] ss:$9 sm:$0xff] %v1570
        %2105 = vst [vmem:[%s1969] ss:$9 sm:$0xff] %v1571
        %v2106 = vld [vmem:[#allocation1] sm:$0xff]
        %2107 = vst [vmem:[#allocation1] ss:$9 sm:$0xff] %v1572
        %2108 = vst [vmem:[%s1957] ss:$9 sm:$0xff] %v1573
        %2109 = vst [vmem:[%s1959] ss:$9 sm:$0xff] %v1574
        %2110 = vst [vmem:[%s1961] ss:$9 sm:$0xff] %v1575
        %2111 = vst [vmem:[%s1963] ss:$9 sm:$0xff] %v1576
        %2112 = vst [vmem:[%s1965] ss:$9 sm:$0xff] %v1577
        %2113 = vst [vmem:[%s1967] ss:$9 sm:$0xff] %v1578
        %2114 = vst [vmem:[%s1969] ss:$9 sm:$0xff] %v1579
        %v2115 = vld [vmem:[#allocation1] sm:$0xff]
        %2116 = vst [vmem:[#allocation1] ss:$9 sm:$0xff] %v1580
        %2117 = vst [vmem:[%s1957] ss:$9 sm:$0xff] %v1581
        %2118 = vst [vmem:[%s1959] ss:$9 sm:$0xff] %v1582
        %2119 = vst [vmem:[%s1961] ss:$9 sm:$0xff] %v1583
        %2120 = vst [vmem:[%s1963] ss:$9 sm:$0xff] %v1584
        %2121 = vst [vmem:[%s1965] ss:$9 sm:$0xff] %v1585
        %2122 = vst [vmem:[%s1967] ss:$9 sm:$0xff] %v1586
        %2123 = vst [vmem:[%s1969] ss:$9 sm:$0xff] %v1587
        %v2124 = vld [vmem:[#allocation1] sm:$0xff]
        %2125 = vst [vmem:[#allocation1] ss:$9 sm:$0xff] %v1588
        %2126 = vst [vmem:[%s1957] ss:$9 sm:$0xff] %v1589
        %2127 = vst [vmem:[%s1959] ss:$9 sm:$0xff] %v1590
        %2128 = vst [vmem:[%s1961] ss:$9 sm:$0xff] %v1591
        %2129 = vst [vmem:[%s1963] ss:$9 sm:$0xff] %v1592
        %2130 = vst [vmem:[%s1965] ss:$9 sm:$0xff] %v1593
        %2131 = vst [vmem:[%s1967] ss:$9 sm:$0xff] %v1594
        %2132 = vst [vmem:[%s1969] ss:$9 sm:$0xff] %v1595
        %v2133 = vld [vmem:[#allocation1] sm:$0xff]
        %2134 = vst [vmem:[#allocation1] ss:$9 sm:$0xff] %v1596
        %2135 = vst [vmem:[%s1957] ss:$9 sm:$0xff] %v1597
        %2136 = vst [vmem:[%s1959] ss:$9 sm:$0xff] %v1598
        %2137 = vst [vmem:[%s1961] ss:$9 sm:$0xff] %v1599
        %2138 = vst [vmem:[%s1963] ss:$9 sm:$0xff] %v1600
        %2139 = vst [vmem:[%s1965] ss:$9 sm:$0xff] %v1601
        %2140 = vst [vmem:[%s1967] ss:$9 sm:$0xff] %v1602
        %2141 = vst [vmem:[%s1969] ss:$9 sm:$0xff] %v1603
        %v2142 = vld [vmem:[#allocation1] sm:$0xff]
        %2143 = vst [vmem:[#allocation1] ss:$9 sm:$0xff] %v1604
        %2144 = vst [vmem:[%s1957] ss:$9 sm:$0xff] %v1605
        %2145 = vst [vmem:[%s1959] ss:$9 sm:$0xff] %v1606
        %2146 = vst [vmem:[%s1961] ss:$9 sm:$0xff] %v1607
        %2147 = vst [vmem:[%s1963] ss:$9 sm:$0xff] %v1608
        %2148 = vst [vmem:[%s1965] ss:$9 sm:$0xff] %v1609
        %2149 = vst [vmem:[%s1967] ss:$9 sm:$0xff] %v1610
        %2150 = vst [vmem:[%s1969] ss:$9 sm:$0xff] %v1611
        %v2151 = vld [vmem:[#allocation1] sm:$0xff]
        %2152 = vst [vmem:[#allocation1] ss:$9 sm:$0xff] %v1612
        %2153 = vst [vmem:[%s1957] ss:$9 sm:$0xff] %v1613
        %2154 = vst [vmem:[%s1959] ss:$9 sm:$0xff] %v1614
        %2155 = vst [vmem:[%s1961] ss:$9 sm:$0xff] %v1615
        %2156 = vst [vmem:[%s1963] ss:$9 sm:$0xff] %v1616
        %2157 = vst [vmem:[%s1965] ss:$9 sm:$0xff] %v1617
        %2158 = vst [vmem:[%s1967] ss:$9 sm:$0xff] %v1618
        %2159 = vst [vmem:[%s1969] ss:$9 sm:$0xff] %v1619
        %v2160 = vld [vmem:[#allocation1] sm:$0xff]
        %2161 = vst [vmem:[#allocation1] ss:$9 sm:$0xff] %v1620
        %2162 = vst [vmem:[%s1957] ss:$9 sm:$0xff] %v1621
        %2163 = vst [vmem:[%s1959] ss:$9 sm:$0xff] %v1622
        %2164 = vst [vmem:[%s1961] ss:$9 sm:$0xff] %v1623
        %2165 = vst [vmem:[%s1963] ss:$9 sm:$0xff] %v1624
        %2166 = vst [vmem:[%s1965] ss:$9 sm:$0xff] %v1625
        %2167 = vst [vmem:[%s1967] ss:$9 sm:$0xff] %v1626
        %2168 = vst [vmem:[%s1969] ss:$9 sm:$0xff] %v1627
        %v2169 = vld [vmem:[#allocation1] sm:$0xff]
        %2170 = vst [vmem:[#allocation1] ss:$9 sm:$0xff] %v1628
        %2171 = vst [vmem:[%s1957] ss:$9 sm:$0xff] %v1629
        %2172 = vst [vmem:[%s1959] ss:$9 sm:$0xff] %v1630
        %2173 = vst [vmem:[%s1961] ss:$9 sm:$0xff] %v1631
        %2174 = vst [vmem:[%s1963] ss:$9 sm:$0xff] %v1632
        %2175 = vst [vmem:[%s1965] ss:$9 sm:$0xff] %v1633
        %2176 = vst [vmem:[%s1967] ss:$9 sm:$0xff] %v1634
        %2177 = vst [vmem:[%s1969] ss:$9 sm:$0xff] %v1635
        %v2178 = vld [vmem:[#allocation1] sm:$0xff]
        %2179 = vst [vmem:[#allocation1] ss:$9 sm:$0xff] %v1636
        %2180 = vst [vmem:[%s1957] ss:$9 sm:$0xff] %v1637
        %2181 = vst [vmem:[%s1959] ss:$9 sm:$0xff] %v1638
        %2182 = vst [vmem:[%s1961] ss:$9 sm:$0xff] %v1639
        %2183 = vst [vmem:[%s1963] ss:$9 sm:$0xff] %v1640
        %2184 = vst [vmem:[%s1965] ss:$9 sm:$0xff] %v1641
        %2185 = vst [vmem:[%s1967] ss:$9 sm:$0xff] %v1642
        %2186 = vst [vmem:[%s1969] ss:$9 sm:$0xff] %v1643
        %v2187 = vld [vmem:[#allocation1] sm:$0xff]
        %2188 = vst [vmem:[#allocation1] ss:$9 sm:$0xff] %v1644
        %2189 = vst [vmem:[%s1957] ss:$9 sm:$0xff] %v1645
        %2190 = vst [vmem:[%s1959] ss:$9 sm:$0xff] %v1646
        %2191 = vst [vmem:[%s1961] ss:$9 sm:$0xff] %v1647
        %2192 = vst [vmem:[%s1963] ss:$9 sm:$0xff] %v1648
        %2193 = vst [vmem:[%s1965] ss:$9 sm:$0xff] %v1649
        %2194 = vst [vmem:[%s1967] ss:$9 sm:$0xff] %v1650
        %2195 = vst [vmem:[%s1969] ss:$9 sm:$0xff] %v1651
        %v2196 = vld [vmem:[#allocation1] sm:$0xff]
        %2197 = vst [vmem:[#allocation1] ss:$9 sm:$0xff] %v1652
        %2198 = vst [vmem:[%s1957] ss:$9 sm:$0xff] %v1653
        %2199 = vst [vmem:[%s1959] ss:$9 sm:$0xff] %v1654
        %2200 = vst [vmem:[%s1961] ss:$9 sm:$0xff] %v1655
        %2201 = vst [vmem:[%s1963] ss:$9 sm:$0xff] %v1656
        %2202 = vst [vmem:[%s1965] ss:$9 sm:$0xff] %v1657
        %2203 = vst [vmem:[%s1967] ss:$9 sm:$0xff] %v1658
        %2204 = vst [vmem:[%s1969] ss:$9 sm:$0xff] %v1659
        %v2205 = vld [vmem:[#allocation1] sm:$0xff]
        %2206 = vst [vmem:[#allocation1] ss:$9 sm:$0xff] %v1660
        %2207 = vst [vmem:[%s1957] ss:$9 sm:$0xff] %v1661
        %2208 = vst [vmem:[%s1959] ss:$9 sm:$0xff] %v1662
        %2209 = vst [vmem:[%s1961] ss:$9 sm:$0xff] %v1663
        %2210 = vst [vmem:[%s1963] ss:$9 sm:$0xff] %v1664
        %2211 = vst [vmem:[%s1965] ss:$9 sm:$0xff] %v1665
        %2212 = vst [vmem:[%s1967] ss:$9 sm:$0xff] %v1666
        %2213 = vst [vmem:[%s1969] ss:$9 sm:$0xff] %v1667
        %v2214 = vld [vmem:[#allocation1] sm:$0xff]
        %2215 = vst [vmem:[#allocation1] ss:$9 sm:$0xff] %v1668
        %2216 = vst [vmem:[%s1957] ss:$9 sm:$0xff] %v1669
        %2217 = vst [vmem:[%s1959] ss:$9 sm:$0xff] %v1670
        %2218 = vst [vmem:[%s1961] ss:$9 sm:$0xff] %v1671
        %2219 = vst [vmem:[%s1963] ss:$9 sm:$0xff] %v1672
        %2220 = vst [vmem:[%s1965] ss:$9 sm:$0xff] %v1673
        %2221 = vst [vmem:[%s1967] ss:$9 sm:$0xff] %v1674
        %2222 = vst [vmem:[%s1969] ss:$9 sm:$0xff] %v1675
        %v2223 = vld [vmem:[#allocation1] sm:$0xff]
        %2224 = vst [vmem:[#allocation1] ss:$9 sm:$0xff] %v1676
        %2225 = vst [vmem:[%s1957] ss:$9 sm:$0xff] %v1677
        %2226 = vst [vmem:[%s1959] ss:$9 sm:$0xff] %v1678
        %2227 = vst [vmem:[%s1961] ss:$9 sm:$0xff] %v1679
        %2228 = vst [vmem:[%s1963] ss:$9 sm:$0xff] %v1680
        %2229 = vst [vmem:[%s1965] ss:$9 sm:$0xff] %v1681
        %2230 = vst [vmem:[%s1967] ss:$9 sm:$0xff] %v1682
        %2231 = vst [vmem:[%s1969] ss:$9 sm:$0xff] %v1683
        %v2232 = vld [vmem:[#allocation1] sm:$0xff]
        %2233 = vst [vmem:[#allocation1] ss:$9 sm:$0xff] %v1684
        %2234 = vst [vmem:[%s1957] ss:$9 sm:$0xff] %v1685
        %2235 = vst [vmem:[%s1959] ss:$9 sm:$0xff] %v1686
        %2236 = vst [vmem:[%s1961] ss:$9 sm:$0xff] %v1687
        %2237 = vst [vmem:[%s1963] ss:$9 sm:$0xff] %v1688
        %2238 = vst [vmem:[%s1965] ss:$9 sm:$0xff] %v1689
        %2239 = vst [vmem:[%s1967] ss:$9 sm:$0xff] %v1690
        %2240 = vst [vmem:[%s1969] ss:$9 sm:$0xff] %v1691
        %v2241 = vld [vmem:[#allocation1] sm:$0xff]
        %2242 = vst [vmem:[#allocation1] ss:$9 sm:$0xff] %v1692
        %2243 = vst [vmem:[%s1957] ss:$9 sm:$0xff] %v1693
        %2244 = vst [vmem:[%s1959] ss:$9 sm:$0xff] %v1694
        %2245 = vst [vmem:[%s1961] ss:$9 sm:$0xff] %v1695
        %2246 = vst [vmem:[%s1963] ss:$9 sm:$0xff] %v1696
        %2247 = vst [vmem:[%s1965] ss:$9 sm:$0xff] %v1697
        %2248 = vst [vmem:[%s1967] ss:$9 sm:$0xff] %v1698
        %2249 = vst [vmem:[%s1969] ss:$9 sm:$0xff] %v1699
        %v2250 = vld [vmem:[#allocation1] sm:$0xff]
        %2251 = vst [vmem:[#allocation1] ss:$9 sm:$0xff] %v1700
        %2252 = vst [vmem:[%s1957] ss:$9 sm:$0xff] %v1701
        %2253 = vst [vmem:[%s1959] ss:$9 sm:$0xff] %v1702
        %2254 = vst [vmem:[%s1961] ss:$9 sm:$0xff] %v1703
        %2255 = vst [vmem:[%s1963] ss:$9 sm:$0xff] %v1704
        %2256 = vst [vmem:[%s1965] ss:$9 sm:$0xff] %v1705
        %2257 = vst [vmem:[%s1967] ss:$9 sm:$0xff] %v1706
        %2258 = vst [vmem:[%s1969] ss:$9 sm:$0xff] %v1707
        %v2259 = vld [vmem:[#allocation1] sm:$0xff]
        %2260 = vst [vmem:[#allocation1] ss:$9 sm:$0xff] %v1708
        %2261 = vst [vmem:[%s1957] ss:$9 sm:$0xff] %v1709
        %2262 = vst [vmem:[%s1959] ss:$9 sm:$0xff] %v1710
        %2263 = vst [vmem:[%s1961] ss:$9 sm:$0xff] %v1711
        %2264 = vst [vmem:[%s1963] ss:$9 sm:$0xff] %v1712
        %2265 = vst [vmem:[%s1965] ss:$9 sm:$0xff] %v1713
        %2266 = vst [vmem:[%s1967] ss:$9 sm:$0xff] %v1714
        %2267 = vst [vmem:[%s1969] ss:$9 sm:$0xff] %v1715
        %v2268 = vld [vmem:[#allocation1] sm:$0xff]
        %2269 = vst [vmem:[#allocation1] ss:$9 sm:$0xff] %v1716
        %2270 = vst [vmem:[%s1957] ss:$9 sm:$0xff] %v1717
        %2271 = vst [vmem:[%s1959] ss:$9 sm:$0xff] %v1718
        %2272 = vst [vmem:[%s1961] ss:$9 sm:$0xff] %v1719
        %2273 = vst [vmem:[%s1963] ss:$9 sm:$0xff] %v1720
        %2274 = vst [vmem:[%s1965] ss:$9 sm:$0xff] %v1721
        %2275 = vst [vmem:[%s1967] ss:$9 sm:$0xff] %v1722
        %2276 = vst [vmem:[%s1969] ss:$9 sm:$0xff] %v1723
        %v2277 = vld [vmem:[#allocation1] sm:$0xff]
        %2278 = vst [vmem:[#allocation1] ss:$9 sm:$0xff] %v1724
        %2279 = vst [vmem:[%s1957] ss:$9 sm:$0xff] %v1725
        %2280 = vst [vmem:[%s1959] ss:$9 sm:$0xff] %v1726
        %2281 = vst [vmem:[%s1961] ss:$9 sm:$0xff] %v1727
        %2282 = vst [vmem:[%s1963] ss:$9 sm:$0xff] %v1728
        %2283 = vst [vmem:[%s1965] ss:$9 sm:$0xff] %v1729
        %2284 = vst [vmem:[%s1967] ss:$9 sm:$0xff] %v1730
        %2285 = vst [vmem:[%s1969] ss:$9 sm:$0xff] %v1731
        %v2286 = vld [vmem:[#allocation1] sm:$0xff]
        %2287 = vst [vmem:[#allocation1] ss:$9 sm:$0xff] %v1732
        %2288 = vst [vmem:[%s1957] ss:$9 sm:$0xff] %v1733
        %2289 = vst [vmem:[%s1959] ss:$9 sm:$0xff] %v1734
        %2290 = vst [vmem:[%s1961] ss:$9 sm:$0xff] %v1735
        %2291 = vst [vmem:[%s1963] ss:$9 sm:$0xff] %v1736
        %2292 = vst [vmem:[%s1965] ss:$9 sm:$0xff] %v1737
        %2293 = vst [vmem:[%s1967] ss:$9 sm:$0xff] %v1738
        %2294 = vst [vmem:[%s1969] ss:$9 sm:$0xff] %v1739
        %v2295 = vld [vmem:[#allocation1] sm:$0xff]
        %2296 = vst [vmem:[#allocation1] ss:$9 sm:$0xff] %v1740
        %2297 = vst [vmem:[%s1957] ss:$9 sm:$0xff] %v1741
        %2298 = vst [vmem:[%s1959] ss:$9 sm:$0xff] %v1742
        %2299 = vst [vmem:[%s1961] ss:$9 sm:$0xff] %v1743
        %2300 = vst [vmem:[%s1963] ss:$9 sm:$0xff] %v1744
        %2301 = vst [vmem:[%s1965] ss:$9 sm:$0xff] %v1745
        %2302 = vst [vmem:[%s1967] ss:$9 sm:$0xff] %v1746
        %2303 = vst [vmem:[%s1969] ss:$9 sm:$0xff] %v1747
        %v2304 = vld [vmem:[#allocation1] sm:$0xff]
        %2305 = vst [vmem:[#allocation1] ss:$9 sm:$0xff] %v1748
        %2306 = vst [vmem:[%s1957] ss:$9 sm:$0xff] %v1749
        %2307 = vst [vmem:[%s1959] ss:$9 sm:$0xff] %v1750
        %2308 = vst [vmem:[%s1961] ss:$9 sm:$0xff] %v1751
        %2309 = vst [vmem:[%s1963] ss:$9 sm:$0xff] %v1752
        %2310 = vst [vmem:[%s1965] ss:$9 sm:$0xff] %v1753
        %2311 = vst [vmem:[%s1967] ss:$9 sm:$0xff] %v1754
        %2312 = vst [vmem:[%s1969] ss:$9 sm:$0xff] %v1755
        %v2313 = vld [vmem:[#allocation1] sm:$0xff]
        %2314 = vst [vmem:[#allocation1] ss:$9 sm:$0xff] %v1756
        %2315 = vst [vmem:[%s1957] ss:$9 sm:$0xff] %v1757
        %2316 = vst [vmem:[%s1959] ss:$9 sm:$0xff] %v1758
        %2317 = vst [vmem:[%s1961] ss:$9 sm:$0xff] %v1759
        %2318 = vst [vmem:[%s1963] ss:$9 sm:$0xff] %v1760
        %2319 = vst [vmem:[%s1965] ss:$9 sm:$0xff] %v1761
        %2320 = vst [vmem:[%s1967] ss:$9 sm:$0xff] %v1762
        %2321 = vst [vmem:[%s1969] ss:$9 sm:$0xff] %v1763
        %v2322 = vld [vmem:[#allocation1] sm:$0xff]
        %2323 = vst [vmem:[#allocation1] ss:$9 sm:$0xff] %v1764
        %2324 = vst [vmem:[%s1957] ss:$9 sm:$0xff] %v1765
        %2325 = vst [vmem:[%s1959] ss:$9 sm:$0xff] %v1766
        %2326 = vst [vmem:[%s1961] ss:$9 sm:$0xff] %v1767
        %2327 = vst [vmem:[%s1963] ss:$9 sm:$0xff] %v1768
        %2328 = vst [vmem:[%s1965] ss:$9 sm:$0xff] %v1769
        %2329 = vst [vmem:[%s1967] ss:$9 sm:$0xff] %v1770
        %2330 = vst [vmem:[%s1969] ss:$9 sm:$0xff] %v1771
        %v2331 = vld [vmem:[#allocation1] sm:$0xff]
        %2332 = vst [vmem:[#allocation1] ss:$9 sm:$0xff] %v1772
        %2333 = vst [vmem:[%s1957] ss:$9 sm:$0xff] %v1773
        %2334 = vst [vmem:[%s1959] ss:$9 sm:$0xff] %v1774
        %2335 = vst [vmem:[%s1961] ss:$9 sm:$0xff] %v1775
        %2336 = vst [vmem:[%s1963] ss:$9 sm:$0xff] %v1776
        %2337 = vst [vmem:[%s1965] ss:$9 sm:$0xff] %v1777
        %2338 = vst [vmem:[%s1967] ss:$9 sm:$0xff] %v1778
        %2339 = vst [vmem:[%s1969] ss:$9 sm:$0xff] %v1779
        %v2340 = vld [vmem:[#allocation1] sm:$0xff]
        %2341 = vst [vmem:[#allocation1] ss:$9 sm:$0xff] %v1780
        %2342 = vst [vmem:[%s1957] ss:$9 sm:$0xff] %v1781
        %2343 = vst [vmem:[%s1959] ss:$9 sm:$0xff] %v1782
        %2344 = vst [vmem:[%s1961] ss:$9 sm:$0xff] %v1783
        %2345 = vst [vmem:[%s1963] ss:$9 sm:$0xff] %v1784
        %2346 = vst [vmem:[%s1965] ss:$9 sm:$0xff] %v1785
        %2347 = vst [vmem:[%s1967] ss:$9 sm:$0xff] %v1786
        %2348 = vst [vmem:[%s1969] ss:$9 sm:$0xff] %v1787
        %v2349 = vld [vmem:[#allocation1] sm:$0xff]
        %2350 = vst [vmem:[#allocation1] ss:$9 sm:$0xff] %v1788
        %2351 = vst [vmem:[%s1957] ss:$9 sm:$0xff] %v1789
        %2352 = vst [vmem:[%s1959] ss:$9 sm:$0xff] %v1790
        %2353 = vst [vmem:[%s1961] ss:$9 sm:$0xff] %v1791
        %2354 = vst [vmem:[%s1963] ss:$9 sm:$0xff] %v1792
        %2355 = vst [vmem:[%s1965] ss:$9 sm:$0xff] %v1793
        %2356 = vst [vmem:[%s1967] ss:$9 sm:$0xff] %v1794
        %2357 = vst [vmem:[%s1969] ss:$9 sm:$0xff] %v1795
        %v2358 = vld [vmem:[#allocation1] sm:$0xff]
        %2359 = vst [vmem:[#allocation1] ss:$9 sm:$0xff] %v1796
        %2360 = vst [vmem:[%s1957] ss:$9 sm:$0xff] %v1797
        %2361 = vst [vmem:[%s1959] ss:$9 sm:$0xff] %v1798
        %2362 = vst [vmem:[%s1961] ss:$9 sm:$0xff] %v1799
        %2363 = vst [vmem:[%s1963] ss:$9 sm:$0xff] %v1800
        %2364 = vst [vmem:[%s1965] ss:$9 sm:$0xff] %v1801
        %2365 = vst [vmem:[%s1967] ss:$9 sm:$0xff] %v1802
        %2366 = vst [vmem:[%s1969] ss:$9 sm:$0xff] %v1803
        %v2367 = vld [vmem:[#allocation1] sm:$0xff]
        %2368 = vst [vmem:[#allocation1] ss:$9 sm:$0xff] %v1804
        %2369 = vst [vmem:[%s1957] ss:$9 sm:$0xff] %v1805
        %2370 = vst [vmem:[%s1959] ss:$9 sm:$0xff] %v1806
        %2371 = vst [vmem:[%s1961] ss:$9 sm:$0xff] %v1807
        %2372 = vst [vmem:[%s1963] ss:$9 sm:$0xff] %v1808
        %2373 = vst [vmem:[%s1965] ss:$9 sm:$0xff] %v1809
        %2374 = vst [vmem:[%s1967] ss:$9 sm:$0xff] %v1810
        %2375 = vst [vmem:[%s1969] ss:$9 sm:$0xff] %v1811
        %v2376 = vld [vmem:[#allocation1] sm:$0xff]
        %2377 = vst [vmem:[#allocation1] ss:$9 sm:$0xff] %v1812
        %2378 = vst [vmem:[%s1957] ss:$9 sm:$0xff] %v1813
        %2379 = vst [vmem:[%s1959] ss:$9 sm:$0xff] %v1814
        %2380 = vst [vmem:[%s1961] ss:$9 sm:$0xff] %v1815
        %2381 = vst [vmem:[%s1963] ss:$9 sm:$0xff] %v1816
        %2382 = vst [vmem:[%s1965] ss:$9 sm:$0xff] %v1817
        %2383 = vst [vmem:[%s1967] ss:$9 sm:$0xff] %v1818
        %2384 = vst [vmem:[%s1969] ss:$9 sm:$0xff] %v1819
        %v2385 = vld [vmem:[#allocation1] sm:$0xff]
        %2386 = vst [vmem:[#allocation1] ss:$9 sm:$0xff] %v1820
        %2387 = vst [vmem:[%s1957] ss:$9 sm:$0xff] %v1821
        %2388 = vst [vmem:[%s1959] ss:$9 sm:$0xff] %v1822
        %2389 = vst [vmem:[%s1961] ss:$9 sm:$0xff] %v1823
        %2390 = vst [vmem:[%s1963] ss:$9 sm:$0xff] %v1824
        %2391 = vst [vmem:[%s1965] ss:$9 sm:$0xff] %v1825
        %2392 = vst [vmem:[%s1967] ss:$9 sm:$0xff] %v1826
        %2393 = vst [vmem:[%s1969] ss:$9 sm:$0xff] %v1827
        %v2394 = vld [vmem:[#allocation1] sm:$0xff]
        %2395 = vst [vmem:[#allocation1] ss:$9 sm:$0xff] %v1828
        %2396 = vst [vmem:[%s1957] ss:$9 sm:$0xff] %v1829
        %2397 = vst [vmem:[%s1959] ss:$9 sm:$0xff] %v1830
        %2398 = vst [vmem:[%s1961] ss:$9 sm:$0xff] %v1831
        %2399 = vst [vmem:[%s1963] ss:$9 sm:$0xff] %v1832
        %2400 = vst [vmem:[%s1965] ss:$9 sm:$0xff] %v1833
        %2401 = vst [vmem:[%s1967] ss:$9 sm:$0xff] %v1834
        %2402 = vst [vmem:[%s1969] ss:$9 sm:$0xff] %v1835
        %v2403 = vld [vmem:[#allocation1] sm:$0xff]
        %2404 = vst [vmem:[#allocation1] ss:$9 sm:$0xff] %v1836
        %2405 = vst [vmem:[%s1957] ss:$9 sm:$0xff] %v1837
        %2406 = vst [vmem:[%s1959] ss:$9 sm:$0xff] %v1838
        %2407 = vst [vmem:[%s1961] ss:$9 sm:$0xff] %v1839
        %2408 = vst [vmem:[%s1963] ss:$9 sm:$0xff] %v1840
        %2409 = vst [vmem:[%s1965] ss:$9 sm:$0xff] %v1841
        %2410 = vst [vmem:[%s1967] ss:$9 sm:$0xff] %v1842
        %2411 = vst [vmem:[%s1969] ss:$9 sm:$0xff] %v1843
        %v2412 = vld [vmem:[#allocation1] sm:$0xff]
        %2413 = vst [vmem:[#allocation1] ss:$9 sm:$0xff] %v1844
        %2414 = vst [vmem:[%s1957] ss:$9 sm:$0xff] %v1845
        %2415 = vst [vmem:[%s1959] ss:$9 sm:$0xff] %v1846
        %2416 = vst [vmem:[%s1961] ss:$9 sm:$0xff] %v1847
        %2417 = vst [vmem:[%s1963] ss:$9 sm:$0xff] %v1848
        %2418 = vst [vmem:[%s1965] ss:$9 sm:$0xff] %v1849
        %2419 = vst [vmem:[%s1967] ss:$9 sm:$0xff] %v1850
        %2420 = vst [vmem:[%s1969] ss:$9 sm:$0xff] %v1851
        %v2421 = vld [vmem:[#allocation1] sm:$0xff]
        %2422 = vst [vmem:[#allocation1] ss:$9 sm:$0xff] %v1852
        %2423 = vst [vmem:[%s1957] ss:$9 sm:$0xff] %v1853
        %2424 = vst [vmem:[%s1959] ss:$9 sm:$0xff] %v1854
        %2425 = vst [vmem:[%s1961] ss:$9 sm:$0xff] %v1855
        %2426 = vst [vmem:[%s1963] ss:$9 sm:$0xff] %v1856
        %2427 = vst [vmem:[%s1965] ss:$9 sm:$0xff] %v1857
        %2428 = vst [vmem:[%s1967] ss:$9 sm:$0xff] %v1858
        %2429 = vst [vmem:[%s1969] ss:$9 sm:$0xff] %v1859
        %v2430 = vld [vmem:[#allocation1] sm:$0xff]
        %2431 = vst [vmem:[#allocation1] ss:$9 sm:$0xff] %v1860
        %2432 = vst [vmem:[%s1957] ss:$9 sm:$0xff] %v1861
        %2433 = vst [vmem:[%s1959] ss:$9 sm:$0xff] %v1862
        %2434 = vst [vmem:[%s1961] ss:$9 sm:$0xff] %v1863
        %2435 = vst [vmem:[%s1963] ss:$9 sm:$0xff] %v1864
        %2436 = vst [vmem:[%s1965] ss:$9 sm:$0xff] %v1865
        %2437 = vst [vmem:[%s1967] ss:$9 sm:$0xff] %v1866
        %2438 = vst [vmem:[%s1969] ss:$9 sm:$0xff] %v1867
        %v2439 = vld [vmem:[#allocation1] sm:$0xff]
        %2440 = vst [vmem:[#allocation1] ss:$9 sm:$0xff] %v1868
        %2441 = vst [vmem:[%s1957] ss:$9 sm:$0xff] %v1869
        %2442 = vst [vmem:[%s1959] ss:$9 sm:$0xff] %v1870
        %2443 = vst [vmem:[%s1961] ss:$9 sm:$0xff] %v1871
        %2444 = vst [vmem:[%s1963] ss:$9 sm:$0xff] %v1872
        %2445 = vst [vmem:[%s1965] ss:$9 sm:$0xff] %v1873
        %2446 = vst [vmem:[%s1967] ss:$9 sm:$0xff] %v1874
        %2447 = vst [vmem:[%s1969] ss:$9 sm:$0xff] %v1875
        %v2448 = vld [vmem:[#allocation1] sm:$0xff]
        %2449 = vst [vmem:[#allocation1] ss:$9 sm:$0xff] %v1876
        %2450 = vst [vmem:[%s1957] ss:$9 sm:$0xff] %v1877
        %2451 = vst [vmem:[%s1959] ss:$9 sm:$0xff] %v1878
        %2452 = vst [vmem:[%s1961] ss:$9 sm:$0xff] %v1879
        %2453 = vst [vmem:[%s1963] ss:$9 sm:$0xff] %v1880
        %2454 = vst [vmem:[%s1965] ss:$9 sm:$0xff] %v1881
        %2455 = vst [vmem:[%s1967] ss:$9 sm:$0xff] %v1882
        %2456 = vst [vmem:[%s1969] ss:$9 sm:$0xff] %v1883
        %v2457 = vld [vmem:[#allocation1] sm:$0xff]
        %2458 = vst [vmem:[#allocation1] ss:$9 sm:$0xff] %v1884
        %2459 = vst [vmem:[%s1957] ss:$9 sm:$0xff] %v1885
        %2460 = vst [vmem:[%s1959] ss:$9 sm:$0xff] %v1886
        %2461 = vst [vmem:[%s1961] ss:$9 sm:$0xff] %v1887
        %2462 = vst [vmem:[%s1963] ss:$9 sm:$0xff] %v1888
        %2463 = vst [vmem:[%s1965] ss:$9 sm:$0xff] %v1889
        %2464 = vst [vmem:[%s1967] ss:$9 sm:$0xff] %v1890
        %2465 = vst [vmem:[%s1969] ss:$9 sm:$0xff] %v1891
        %v2466 = vld [vmem:[#allocation1] sm:$0xff]
        %2467 = vst [vmem:[#allocation1] ss:$9 sm:$0xff] %v1892
        %2468 = vst [vmem:[%s1957] ss:$9 sm:$0xff] %v1893
        %2469 = vst [vmem:[%s1959] ss:$9 sm:$0xff] %v1894
        %2470 = vst [vmem:[%s1961] ss:$9 sm:$0xff] %v1895
        %2471 = vst [vmem:[%s1963] ss:$9 sm:$0xff] %v1896
        %2472 = vst [vmem:[%s1965] ss:$9 sm:$0xff] %v1897
        %2473 = vst [vmem:[%s1967] ss:$9 sm:$0xff] %v1898
        %2474 = vst [vmem:[%s1969] ss:$9 sm:$0xff] %v1899
        %v2475 = vld [vmem:[#allocation1] sm:$0xff]
        %2476 = vst [vmem:[#allocation1] ss:$9 sm:$0xff] %v1900
        %2477 = vst [vmem:[%s1957] ss:$9 sm:$0xff] %v1901
        %2478 = vst [vmem:[%s1959] ss:$9 sm:$0xff] %v1902
        %2479 = vst [vmem:[%s1961] ss:$9 sm:$0xff] %v1903
        %2480 = vst [vmem:[%s1963] ss:$9 sm:$0xff] %v1904
        %2481 = vst [vmem:[%s1965] ss:$9 sm:$0xff] %v1905
        %2482 = vst [vmem:[%s1967] ss:$9 sm:$0xff] %v1906
        %2483 = vst [vmem:[%s1969] ss:$9 sm:$0xff] %v1907
        %v2484 = vld [vmem:[#allocation1] sm:$0xff]
        %2485 = vst [vmem:[#allocation1] ss:$9 sm:$0xff] %v1908
        %2486 = vst [vmem:[%s1957] ss:$9 sm:$0xff] %v1909
        %2487 = vst [vmem:[%s1959] ss:$9 sm:$0xff] %v1910
        %2488 = vst [vmem:[%s1961] ss:$9 sm:$0xff] %v1911
        %2489 = vst [vmem:[%s1963] ss:$9 sm:$0xff] %v1912
        %2490 = vst [vmem:[%s1965] ss:$9 sm:$0xff] %v1913
        %2491 = vst [vmem:[%s1967] ss:$9 sm:$0xff] %v1914
        %2492 = vst [vmem:[%s1969] ss:$9 sm:$0xff] %v1915
        %v2493 = vld [vmem:[#allocation1] sm:$0xff]
        %2494 = vst [vmem:[#allocation1] ss:$9 sm:$0xff] %v1916
        %2495 = vst [vmem:[%s1957] ss:$9 sm:$0xff] %v1917
        %2496 = vst [vmem:[%s1959] ss:$9 sm:$0xff] %v1918
        %2497 = vst [vmem:[%s1961] ss:$9 sm:$0xff] %v1919
        %2498 = vst [vmem:[%s1963] ss:$9 sm:$0xff] %v1920
        %2499 = vst [vmem:[%s1965] ss:$9 sm:$0xff] %v1921
        %2500 = vst [vmem:[%s1967] ss:$9 sm:$0xff] %v1922
        %2501 = vst [vmem:[%s1969] ss:$9 sm:$0xff] %v1923
        %v2502 = vld [vmem:[#allocation1] sm:$0xff]
        %2503 = vst [vmem:[#allocation1] ss:$9 sm:$0xff] %v1924
        %2504 = vst [vmem:[%s1957] ss:$9 sm:$0xff] %v1925
        %2505 = vst [vmem:[%s1959] ss:$9 sm:$0xff] %v1926
        %2506 = vst [vmem:[%s1961] ss:$9 sm:$0xff] %v1927
        %2507 = vst [vmem:[%s1963] ss:$9 sm:$0xff] %v1928
        %2508 = vst [vmem:[%s1965] ss:$9 sm:$0xff] %v1929
        %2509 = vst [vmem:[%s1967] ss:$9 sm:$0xff] %v1930
        %2510 = vst [vmem:[%s1969] ss:$9 sm:$0xff] %v1931
        %v2511 = vld [vmem:[#allocation1] sm:$0xff]
        %2512 = vst [vmem:[#allocation1] ss:$9 sm:$0xff] %v1932
        %2513 = vst [vmem:[%s1957] ss:$9 sm:$0xff] %v1933
        %2514 = vst [vmem:[%s1959] ss:$9 sm:$0xff] %v1934
        %2515 = vst [vmem:[%s1961] ss:$9 sm:$0xff] %v1935
        %2516 = vst [vmem:[%s1963] ss:$9 sm:$0xff] %v1936
        %2517 = vst [vmem:[%s1965] ss:$9 sm:$0xff] %v1937
        %2518 = vst [vmem:[%s1967] ss:$9 sm:$0xff] %v1938
        %2519 = vst [vmem:[%s1969] ss:$9 sm:$0xff] %v1939
        %v2520 = vld [vmem:[#allocation1] sm:$0xff]
        %2521 = vst [vmem:[#allocation1] ss:$9 sm:$0xff] %v1940
        %2522 = vst [vmem:[%s1957] ss:$9 sm:$0xff] %v1941
        %2523 = vst [vmem:[%s1959] ss:$9 sm:$0xff] %v1942
        %2524 = vst [vmem:[%s1961] ss:$9 sm:$0xff] %v1943
        %2525 = vst [vmem:[%s1963] ss:$9 sm:$0xff] %v1944
        %2526 = vst [vmem:[%s1965] ss:$9 sm:$0xff] %v1945
        %2527 = vst [vmem:[%s1967] ss:$9 sm:$0xff] %v1946
        %2528 = vst [vmem:[%s1969] ss:$9 sm:$0xff] %v1947
        %v2529 = vld [vmem:[#allocation1] sm:$0xff]
        %2530 = vst [vmem:[#allocation1] ss:$9 sm:$0xff] %v1948
        %2531 = vst [vmem:[%s1957] ss:$9 sm:$0xff] %v1949
        %2532 = vst [vmem:[%s1959] ss:$9 sm:$0xff] %v1950
        %2533 = vst [vmem:[%s1961] ss:$9 sm:$0xff] %v1951
        %2534 = vst [vmem:[%s1963] ss:$9 sm:$0xff] %v1952
        %2535 = vst [vmem:[%s1965] ss:$9 sm:$0xff] %v1953
        %2536 = vst [vmem:[%s1967] ss:$9 sm:$0xff] %v1954
        %2537 = vst [vmem:[%s1969] ss:$9 sm:$0xff] %v1955
        %v2538 = vld [vmem:[#allocation1] sm:$0xff]
        %2539 = vset.pattern.permute.xlu0 0
        %2540 = vperm.xlu0 %2539, %v1971
        %v2541 = vpop.permute.xlu0 %2540
        %2542 = vset.pattern.permute.xlu0 0
        %2543 = vperm.xlu0 %2542, %v1980
        %v2544 = vpop.permute.xlu0 %2543
        %2545 = vset.pattern.permute.xlu0 0
        %2546 = vperm.xlu0 %2545, %v1989
        %v2547 = vpop.permute.xlu0 %2546
        %2548 = vset.pattern.permute.xlu0 0
        %2549 = vperm.xlu0 %2548, %v1998
        %v2550 = vpop.permute.xlu0 %2549
        %2551 = vset.pattern.permute.xlu0 0
        %2552 = vperm.xlu0 %2551, %v2007
        %v2553 = vpop.permute.xlu0 %2552
        %2554 = vset.pattern.permute.xlu0 0
        %2555 = vperm.xlu0 %2554, %v2016
        %v2556 = vpop.permute.xlu0 %2555
        %2557 = vset.pattern.permute.xlu0 0
        %2558 = vperm.xlu0 %2557, %v2025
        %v2559 = vpop.permute.xlu0 %2558
        %2560 = vset.pattern.permute.xlu0 0
        %2561 = vperm.xlu0 %2560, %v2034
        %v2562 = vpop.permute.xlu0 %2561
        %2563 = vset.pattern.permute.xlu0 0
        %2564 = vperm.xlu0 %2563, %v2043
        %v2565 = vpop.permute.xlu0 %2564
        %2566 = vset.pattern.permute.xlu0 0
        %2567 = vperm.xlu0 %2566, %v2052
        %v2568 = vpop.permute.xlu0 %2567
        %2569 = vset.pattern.permute.xlu0 0
        %2570 = vperm.xlu0 %2569, %v2061
        %v2571 = vpop.permute.xlu0 %2570
        %2572 = vset.pattern.permute.xlu0 0
        %2573 = vperm.xlu0 %2572, %v2070
        %v2574 = vpop.permute.xlu0 %2573
        %2575 = vset.pattern.permute.xlu0 0
        %2576 = vperm.xlu0 %2575, %v2079
        %v2577 = vpop.permute.xlu0 %2576
        %2578 = vset.pattern.permute.xlu0 0
        %2579 = vperm.xlu0 %2578, %v2088
        %v2580 = vpop.permute.xlu0 %2579
        %2581 = vset.pattern.permute.xlu0 0
        %2582 = vperm.xlu0 %2581, %v2097
        %v2583 = vpop.permute.xlu0 %2582
        %2584 = vset.pattern.permute.xlu0 0
        %2585 = vperm.xlu0 %2584, %v2106
        %v2586 = vpop.permute.xlu0 %2585
        %2587 = vset.pattern.permute.xlu0 0
        %2588 = vperm.xlu0 %2587, %v2115
        %v2589 = vpop.permute.xlu0 %2588
        %2590 = vset.pattern.permute.xlu0 0
        %2591 = vperm.xlu0 %2590, %v2124
        %v2592 = vpop.permute.xlu0 %2591
        %2593 = vset.pattern.permute.xlu0 0
        %2594 = vperm.xlu0 %2593, %v2133
        %v2595 = vpop.permute.xlu0 %2594
        %2596 = vset.pattern.permute.xlu0 0
        %2597 = vperm.xlu0 %2596, %v2142
        %v2598 = vpop.permute.xlu0 %2597
        %2599 = vset.pattern.permute.xlu0 0
        %2600 = vperm.xlu0 %2599, %v2151
        %v2601 = vpop.permute.xlu0 %2600
        %2602 = vset.pattern.permute.xlu0 0
        %2603 = vperm.xlu0 %2602, %v2160
        %v2604 = vpop.permute.xlu0 %2603
        %2605 = vset.pattern.permute.xlu0 0
        %2606 = vperm.xlu0 %2605, %v2169
        %v2607 = vpop.permute.xlu0 %2606
        %2608 = vset.pattern.permute.xlu0 0
        %2609 = vperm.xlu0 %2608, %v2178
        %v2610 = vpop.permute.xlu0 %2609
        %2611 = vset.pattern.permute.xlu0 0
        %2612 = vperm.xlu0 %2611, %v2187
        %v2613 = vpop.permute.xlu0 %2612
        %2614 = vset.pattern.permute.xlu0 0
        %2615 = vperm.xlu0 %2614, %v2196
        %v2616 = vpop.permute.xlu0 %2615
        %2617 = vset.pattern.permute.xlu0 0
        %2618 = vperm.xlu0 %2617, %v2205
        %v2619 = vpop.permute.xlu0 %2618
        %2620 = vset.pattern.permute.xlu0 0
        %2621 = vperm.xlu0 %2620, %v2214
        %v2622 = vpop.permute.xlu0 %2621
        %2623 = vset.pattern.permute.xlu0 0
        %2624 = vperm.xlu0 %2623, %v2223
        %v2625 = vpop.permute.xlu0 %2624
        %2626 = vset.pattern.permute.xlu0 0
        %2627 = vperm.xlu0 %2626, %v2232
        %v2628 = vpop.permute.xlu0 %2627
        %2629 = vset.pattern.permute.xlu0 0
        %2630 = vperm.xlu0 %2629, %v2241
        %v2631 = vpop.permute.xlu0 %2630
        %2632 = vset.pattern.permute.xlu0 0
        %2633 = vperm.xlu0 %2632, %v2250
        %v2634 = vpop.permute.xlu0 %2633
        %2635 = vset.pattern.permute.xlu0 0
        %2636 = vperm.xlu0 %2635, %v2259
        %v2637 = vpop.permute.xlu0 %2636
        %2638 = vset.pattern.permute.xlu0 0
        %2639 = vperm.xlu0 %2638, %v2268
        %v2640 = vpop.permute.xlu0 %2639
        %2641 = vset.pattern.permute.xlu0 0
        %2642 = vperm.xlu0 %2641, %v2277
        %v2643 = vpop.permute.xlu0 %2642
        %2644 = vset.pattern.permute.xlu0 0
        %2645 = vperm.xlu0 %2644, %v2286
        %v2646 = vpop.permute.xlu0 %2645
        %2647 = vset.pattern.permute.xlu0 0
        %2648 = vperm.xlu0 %2647, %v2295
        %v2649 = vpop.permute.xlu0 %2648
        %2650 = vset.pattern.permute.xlu0 0
        %2651 = vperm.xlu0 %2650, %v2304
        %v2652 = vpop.permute.xlu0 %2651
        %2653 = vset.pattern.permute.xlu0 0
        %2654 = vperm.xlu0 %2653, %v2313
        %v2655 = vpop.permute.xlu0 %2654
        %2656 = vset.pattern.permute.xlu0 0
        %2657 = vperm.xlu0 %2656, %v2322
        %v2658 = vpop.permute.xlu0 %2657
        %2659 = vset.pattern.permute.xlu0 0
        %2660 = vperm.xlu0 %2659, %v2331
        %v2661 = vpop.permute.xlu0 %2660
        %2662 = vset.pattern.permute.xlu0 0
        %2663 = vperm.xlu0 %2662, %v2340
        %v2664 = vpop.permute.xlu0 %2663
        %2665 = vset.pattern.permute.xlu0 0
        %2666 = vperm.xlu0 %2665, %v2349
        %v2667 = vpop.permute.xlu0 %2666
        %2668 = vset.pattern.permute.xlu0 0
        %2669 = vperm.xlu0 %2668, %v2358
        %v2670 = vpop.permute.xlu0 %2669
        %2671 = vset.pattern.permute.xlu0 0
        %2672 = vperm.xlu0 %2671, %v2367
        %v2673 = vpop.permute.xlu0 %2672
        %2674 = vset.pattern.permute.xlu0 0
        %2675 = vperm.xlu0 %2674, %v2376
        %v2676 = vpop.permute.xlu0 %2675
        %2677 = vset.pattern.permute.xlu0 0
        %2678 = vperm.xlu0 %2677, %v2385
        %v2679 = vpop.permute.xlu0 %2678
        %2680 = vset.pattern.permute.xlu0 0
        %2681 = vperm.xlu0 %2680, %v2394
        %v2682 = vpop.permute.xlu0 %2681
        %2683 = vset.pattern.permute.xlu0 0
        %2684 = vperm.xlu0 %2683, %v2403
        %v2685 = vpop.permute.xlu0 %2684
        %2686 = vset.pattern.permute.xlu0 0
        %2687 = vperm.xlu0 %2686, %v2412
        %v2688 = vpop.permute.xlu0 %2687
        %2689 = vset.pattern.permute.xlu0 0
        %2690 = vperm.xlu0 %2689, %v2421
        %v2691 = vpop.permute.xlu0 %2690
        %2692 = vset.pattern.permute.xlu0 0
        %2693 = vperm.xlu0 %2692, %v2430
        %v2694 = vpop.permute.xlu0 %2693
        %2695 = vset.pattern.permute.xlu0 0
        %2696 = vperm.xlu0 %2695, %v2439
        %v2697 = vpop.permute.xlu0 %2696
        %2698 = vset.pattern.permute.xlu0 0
        %2699 = vperm.xlu0 %2698, %v2448
        %v2700 = vpop.permute.xlu0 %2699
        %2701 = vset.pattern.permute.xlu0 0
        %2702 = vperm.xlu0 %2701, %v2457
        %v2703 = vpop.permute.xlu0 %2702
        %2704 = vset.pattern.permute.xlu0 0
        %2705 = vperm.xlu0 %2704, %v2466
        %v2706 = vpop.permute.xlu0 %2705
        %2707 = vset.pattern.permute.xlu0 0
        %2708 = vperm.xlu0 %2707, %v2475
        %v2709 = vpop.permute.xlu0 %2708
        %2710 = vset.pattern.permute.xlu0 0
        %2711 = vperm.xlu0 %2710, %v2484
        %v2712 = vpop.permute.xlu0 %2711
        %2713 = vset.pattern.permute.xlu0 0
        %2714 = vperm.xlu0 %2713, %v2493
        %v2715 = vpop.permute.xlu0 %2714
        %2716 = vset.pattern.permute.xlu0 0
        %2717 = vperm.xlu0 %2716, %v2502
        %v2718 = vpop.permute.xlu0 %2717
        %2719 = vset.pattern.permute.xlu0 0
        %2720 = vperm.xlu0 %2719, %v2511
        %v2721 = vpop.permute.xlu0 %2720
        %2722 = vset.pattern.permute.xlu0 0
        %2723 = vperm.xlu0 %2722, %v2520
        %v2724 = vpop.permute.xlu0 %2723
        %2725 = vset.pattern.permute.xlu0 0
        %2726 = vperm.xlu0 %2725, %v2529
        %v2727 = vpop.permute.xlu0 %2726
        %2728 = vset.pattern.permute.xlu0 0
        %2729 = vperm.xlu0 %2728, %v2538
        %v2730 = vpop.permute.xlu0 %2729
        %v2731 = vlaneseq
        %v2732 = vand.u32 %v2731, 127
        %v2733 = vperm.slane %v2541, %v2732
        %v2734 = vadd.s32 %v2732, 4294967288
        %v2735 = vperm.slane %v2544, %v2734
        %vm2736 = vcmask 130112
        %v2737 = vsel %vm2736, %v2735, %v2733
        %v2738 = vadd.s32 %v2732, 4294967280
        %v2739 = vperm.slane %v2547, %v2738
        %vm2740 = vcmask 195712
        %v2741 = vsel %vm2740, %v2739, %v2737
        %v2742 = vadd.s32 %v2732, 4294967272
        %v2743 = vperm.slane %v2550, %v2742
        %vm2744 = vcmask 261312
        %v2745 = vsel %vm2744, %v2743, %v2741
        %v2746 = vadd.s32 %v2732, 4294967264
        %v2747 = vperm.slane %v2553, %v2746
        %vm2748 = vcmask 326912
        %v2749 = vsel %vm2748, %v2747, %v2745
        %v2750 = vadd.s32 %v2732, 4294967256
        %v2751 = vperm.slane %v2556, %v2750
        %vm2752 = vcmask 392512
        %v2753 = vsel %vm2752, %v2751, %v2749
        %v2754 = vadd.s32 %v2732, 4294967248
        %v2755 = vperm.slane %v2559, %v2754
        %vm2756 = vcmask 458112
        %v2757 = vsel %vm2756, %v2755, %v2753
        %v2758 = vadd.s32 %v2732, 4294967240
        %v2759 = vperm.slane %v2562, %v2758
        %vm2760 = vcmask 523712
        %v2761 = vsel %vm2760, %v2759, %v2757
        %v2762 = vadd.s32 %v2732, 4294967232
        %v2763 = vperm.slane %v2565, %v2762
        %vm2764 = vcmask 589312
        %v2765 = vsel %vm2764, %v2763, %v2761
        %v2766 = vadd.s32 %v2732, 4294967224
        %v2767 = vperm.slane %v2568, %v2766
        %vm2768 = vcmask 654912
        %v2769 = vsel %vm2768, %v2767, %v2765
        %v2770 = vadd.s32 %v2732, 4294967216
        %v2771 = vperm.slane %v2571, %v2770
        %vm2772 = vcmask 720512
        %v2773 = vsel %vm2772, %v2771, %v2769
        %v2774 = vadd.s32 %v2732, 4294967208
        %v2775 = vperm.slane %v2574, %v2774
        %vm2776 = vcmask 786112
        %v2777 = vsel %vm2776, %v2775, %v2773
        %v2778 = vadd.s32 %v2732, 4294967200
        %v2779 = vperm.slane %v2577, %v2778
        %vm2780 = vcmask 851712
        %v2781 = vsel %vm2780, %v2779, %v2777
        %v2782 = vadd.s32 %v2732, 4294967192
        %v2783 = vperm.slane %v2580, %v2782
        %vm2784 = vcmask 917312
        %v2785 = vsel %vm2784, %v2783, %v2781
        %v2786 = vadd.s32 %v2732, 4294967184
        %v2787 = vperm.slane %v2583, %v2786
        %vm2788 = vcmask 982912
        %v2789 = vsel %vm2788, %v2787, %v2785
        %v2790 = vadd.s32 %v2732, 4294967176
        %v2791 = vperm.slane %v2586, %v2790
        %vm2792 = vcmask 1048512
        %v2793 = vsel %vm2792, %v2791, %v2789
        %v2794 = vperm.slane %v2589, %v2732
        %v2795 = vperm.slane %v2592, %v2734
        %v2796 = vsel %vm2736, %v2795, %v2794
        %v2797 = vperm.slane %v2595, %v2738
        %v2798 = vsel %vm2740, %v2797, %v2796
        %v2799 = vperm.slane %v2598, %v2742
        %v2800 = vsel %vm2744, %v2799, %v2798
        %v2801 = vperm.slane %v2601, %v2746
        %v2802 = vsel %vm2748, %v2801, %v2800
        %v2803 = vperm.slane %v2604, %v2750
        %v2804 = vsel %vm2752, %v2803, %v2802
        %v2805 = vperm.slane %v2607, %v2754
        %v2806 = vsel %vm2756, %v2805, %v2804
        %v2807 = vperm.slane %v2610, %v2758
        %v2808 = vsel %vm2760, %v2807, %v2806
        %v2809 = vperm.slane %v2613, %v2762
        %v2810 = vsel %vm2764, %v2809, %v2808
        %v2811 = vperm.slane %v2616, %v2766
        %v2812 = vsel %vm2768, %v2811, %v2810
        %v2813 = vperm.slane %v2619, %v2770
        %v2814 = vsel %vm2772, %v2813, %v2812
        %v2815 = vperm.slane %v2622, %v2774
        %v2816 = vsel %vm2776, %v2815, %v2814
        %v2817 = vperm.slane %v2625, %v2778
        %v2818 = vsel %vm2780, %v2817, %v2816
        %v2819 = vperm.slane %v2628, %v2782
        %v2820 = vsel %vm2784, %v2819, %v2818
        %v2821 = vperm.slane %v2631, %v2786
        %v2822 = vsel %vm2788, %v2821, %v2820
        %v2823 = vperm.slane %v2634, %v2790
        %v2824 = vsel %vm2792, %v2823, %v2822
        %v2825 = vperm.slane %v2637, %v2732
        %v2826 = vperm.slane %v2640, %v2734
        %v2827 = vsel %vm2736, %v2826, %v2825
        %v2828 = vperm.slane %v2643, %v2738
        %v2829 = vsel %vm2740, %v2828, %v2827
        %v2830 = vperm.slane %v2646, %v2742
        %v2831 = vsel %vm2744, %v2830, %v2829
        %v2832 = vperm.slane %v2649, %v2746
        %v2833 = vsel %vm2748, %v2832, %v2831
        %v2834 = vperm.slane %v2652, %v2750
        %v2835 = vsel %vm2752, %v2834, %v2833
        %v2836 = vperm.slane %v2655, %v2754
        %v2837 = vsel %vm2756, %v2836, %v2835
        %v2838 = vperm.slane %v2658, %v2758
        %v2839 = vsel %vm2760, %v2838, %v2837
        %v2840 = vperm.slane %v2661, %v2762
        %v2841 = vsel %vm2764, %v2840, %v2839
        %v2842 = vperm.slane %v2664, %v2766
        %v2843 = vsel %vm2768, %v2842, %v2841
        %v2844 = vperm.slane %v2667, %v2770
        %v2845 = vsel %vm2772, %v2844, %v2843
        %v2846 = vperm.slane %v2670, %v2774
        %v2847 = vsel %vm2776, %v2846, %v2845
        %v2848 = vperm.slane %v2673, %v2778
        %v2849 = vsel %vm2780, %v2848, %v2847
        %v2850 = vperm.slane %v2676, %v2782
        %v2851 = vsel %vm2784, %v2850, %v2849
        %v2852 = vperm.slane %v2679, %v2786
        %v2853 = vsel %vm2788, %v2852, %v2851
        %v2854 = vperm.slane %v2682, %v2790
        %v2855 = vsel %vm2792, %v2854, %v2853
        %v2856 = vperm.slane %v2685, %v2732
        %v2857 = vperm.slane %v2688, %v2734
        %v2858 = vsel %vm2736, %v2857, %v2856
        %v2859 = vperm.slane %v2691, %v2738
        %v2860 = vsel %vm2740, %v2859, %v2858
        %v2861 = vperm.slane %v2694, %v2742
        %v2862 = vsel %vm2744, %v2861, %v2860
        %v2863 = vperm.slane %v2697, %v2746
        %v2864 = vsel %vm2748, %v2863, %v2862
        %v2865 = vperm.slane %v2700, %v2750
        %v2866 = vsel %vm2752, %v2865, %v2864
        %v2867 = vperm.slane %v2703, %v2754
        %v2868 = vsel %vm2756, %v2867, %v2866
        %v2869 = vperm.slane %v2706, %v2758
        %v2870 = vsel %vm2760, %v2869, %v2868
        %v2871 = vperm.slane %v2709, %v2762
        %v2872 = vsel %vm2764, %v2871, %v2870
        %v2873 = vperm.slane %v2712, %v2766
        %v2874 = vsel %vm2768, %v2873, %v2872
        %v2875 = vperm.slane %v2715, %v2770
        %v2876 = vsel %vm2772, %v2875, %v2874
        %v2877 = vperm.slane %v2718, %v2774
        %v2878 = vsel %vm2776, %v2877, %v2876
        %v2879 = vperm.slane %v2721, %v2778
        %v2880 = vsel %vm2780, %v2879, %v2878
        %v2881 = vperm.slane %v2724, %v2782
        %v2882 = vsel %vm2784, %v2881, %v2880
        %v2883 = vperm.slane %v2727, %v2786
        %v2884 = vsel %vm2788, %v2883, %v2882
        %v2885 = vperm.slane %v2730, %v2790
        %v2886 = vsel %vm2792, %v2885, %v2884
        %v2887 = vrot.slane %v2824, 7
        %v2888 = vrot.slane %v2855, 6
        %v2889 = vrot.slane %v2886, 5
        %vm2890 = vcmask 1040384
        %v2891 = vsel %vm2890, %v2793, %v2887
        %vm2892 = vcmask 1042434
        %v2893 = vsel %vm2892, %v2888, %v2889
        %vm2894 = vcmask 1041408
        %v2895 = vsel %vm2894, %v2891, %v2893
        %v2897 = vlaneseq
        %vm2898 = vcmp.ge.s32.totalorder %v2897, 0
        %vm2899 = vcmp.lt.s32.totalorder %v2897, 512
        %vm2900 = vmand %vm2898, %vm2899
        %2901 = vst.msk [vmem:[%s274] sm:$0xf] %vm2900, %v2895
        %s2902 = sand.u32 %s183, 1
        %s2903 = scalar_lea.sflag [#allocation4], %s2902
        %s2904 = sand.u32 %s183, 1
        %s2905 = smul.addr %s2904, 4
        %s2906 = scalar_lea.vmem [#allocation3], %s2905
        // Predicated region
        $region49: #{tpu_custom_call.1} parent=47 // pred_check
          %p2907 = pneg %p193
        $region50: #{tpu_custom_call.1} parent=47 // pred_check_branch
          %2909 = sbr.rel (%p2907) target = $region52
        $region51: #{tpu_custom_call.1} parent=47 // pred_region
          %s2910 = smul.u32 4, %s23
          %2912 = vsyncadd %s2903, 0
          %s2913 = scalar_lea.hbm %s7, %s2910
          %s2915 = sshll.u32 %s2906, 4
          %s2916 = int_to_ptr.vmem [resolvable:$true] %s2915
          %s2917 = sshll.u32 %s2913, 4
          %s2918 = int_to_ptr.hbm [resolvable:$true] %s2917
          %2920 = dma.vmem_to_hbm [thread:$0]  %s2916, 64, %s2918, %s2903
        $region52: #{tpu_custom_call.1} parent=47 // pred_fallthru
          _
      $region48: #{tpu_custom_call.1} parent=5 // pred_fallthru
        _
      %p2921 = scmp.le.s32.totalorder 2, %s18
      // Predicated region
      $region53: #{tpu_custom_call.1} parent=5 // pred_check
        %p2922 = pneg %p2921
      $region54: #{tpu_custom_call.1} parent=5 // pred_check_branch
        %2924 = sbr.rel (%p2922) target = $region56
      $region55: #{tpu_custom_call.1} parent=5 // pred_region
        %s2925 = ssub.s32 %s18, 2
        // Predicated region
        $region57: #{tpu_custom_call.1} parent=55 // pred_check
          %p2926 = pneg %p199
        $region58: #{tpu_custom_call.1} parent=55 // pred_check_branch
          %2928 = sbr.rel (%p2926) target = $region60
        $region59: #{tpu_custom_call.1} parent=55 // pred_region
          %s2929 = sand.u32 %s184, 1
          %s2930 = scalar_lea.sflag [#allocation4], %s2929
          %s2931 = sand.u32 %s184, 1
          %s2932 = smul.addr %s2931, 4
          %s2933 = scalar_lea.vmem [#allocation3], %s2932
          %2935 = dma.done %s2930, 64
        $region60: #{tpu_custom_call.1} parent=55 // pred_fallthru
          _
      $region56: #{tpu_custom_call.1} parent=5 // pred_fallthru
        _
    $region6: #{tpu_custom_call.1} parent=1 // loop_footer
      %s22 = sadd.s32 1, %s18
    $region7: #{tpu_custom_call.1} parent=1 // loop_footer_branch
      %17 = sbr.rel target = $region3
    $region8: #{tpu_custom_call.1} parent=1 // loop_exit
      _
    %2936 = vsyncpa [#allocation4], 1
    %s2937 = scalar_lea.sflag [#allocation4], 1
    %2938 = vsyncpa %s2937, 1

</llo_original>
